<compile_context>
chip_gen: v6e
topology: v6e:2x2x1
jax: 0.10.0
libtpu: 0.0.40
codegen_flags: <defaults>
</compile_context>

<pallas_src>
import jax
import jax.numpy as jnp
from jax.experimental import pallas as pl
from jax.experimental.pallas import tpu as pltpu

BN_EPS = 1e-5
C_PAD = 128          # pad class dim to a full lane width -> dense stores / writeback DMA
NEG_PAD = -1e30      # bias for padded logit lanes; exp(NEG_PAD - max) == 0 -> softmax unchanged


def _causal_kernel(xo_ref, xc_ref,
                   g1_ref, be1_ref, w1_ref, b1_ref,
                   g2_ref, be2_ref, w2_ref, b2_ref,
                   out_c_ref, out_o_ref, out_co_ref):
    """All three readout heads (0=c, 1=o, 2=co) in one launch, fully VMEM-resident."""
    xo = xo_ref[...].astype(jnp.float32)     # [B, H]
    xc = xc_ref[...].astype(jnp.float32)     # [B, H]
    B = xo.shape[0]

    def head(x, h):
        # --- BatchNorm1d #1 (training mode: batch mean, biased variance) ---
        m1 = jnp.mean(x, axis=0, keepdims=True)
        v1 = jnp.mean((x - m1) * (x - m1), axis=0, keepdims=True)
        xn = (x - m1) * jax.lax.rsqrt(v1 + BN_EPS) * g1_ref[h] + be1_ref[h]
        # --- Linear #1 + ReLU (MXU) ---
        h1 = jnp.dot(xn, w1_ref[h], preferred_element_type=jnp.float32) + b1_ref[h]
        h1 = jnp.maximum(h1, 0.0)
        # --- BatchNorm1d #2 ---
        m2 = jnp.mean(h1, axis=0, keepdims=True)
        v2 = jnp.mean((h1 - m2) * (h1 - m2), axis=0, keepdims=True)
        hn = (h1 - m2) * jax.lax.rsqrt(v2 + BN_EPS) * g2_ref[h] + be2_ref[h]
        # --- Linear #2 (class dim pre-padded to C_PAD lanes) + log_softmax ---
        logits = jnp.dot(hn, w2_ref[h], preferred_element_type=jnp.float32) + b2_ref[h]
        mx = jnp.max(logits, axis=-1, keepdims=True)
        sh = logits - mx
        lse = jnp.log(jnp.sum(jnp.exp(sh), axis=-1, keepdims=True))
        return sh - lse

    out_c_ref[...] = head(xc, 0)
    out_o_ref[...] = head(xo, 1)

    # random_readout_layer input, formed in VMEM: x_co[i*B + j] = xo[i] + xc[j].
    # TODO(synk): for large B, row-tile this head over a grid (parallel on v7x)
    # with a two-pass BN-stat reduction instead of this fully unrolled concat.
    x_co = jnp.concatenate([xo[i:i + 1, :] + xc for i in range(B)], axis=0)  # [B*B, H]
    out_co_ref[...] = head(x_co, 2)


def causal_forward(xo, xc, packed, num_classes):
    """Replicates Causal.forward(xo, xc) with args.cat_or_add == 'add'."""
    B, H = xo.shape
    Cp = packed["w2"].shape[-1]
    n_rows = 2 * B + B * B
    flops = 2 * n_rows * H * H + 2 * n_rows * H * Cp
    transcendentals = n_rows * (Cp + 3)                     # exp per lane + rsqrt/log
    bytes_accessed = 4 * (2 * B * H                         # xo, xc
                          + 3 * (H * H + H * Cp + 5 * H + Cp)   # stacked params
                          + n_rows * Cp)                    # padded outputs
    vmem = pl.BlockSpec(memory_space=pltpu.MemorySpace.VMEM)

    out_c, out_o, out_co = pl.pallas_call(
        _causal_kernel,
        out_shape=(
            jax.ShapeDtypeStruct((B, Cp), jnp.float32),
            jax.ShapeDtypeStruct((B, Cp), jnp.float32),
            jax.ShapeDtypeStruct((B * B, Cp), jnp.float32),
        ),
        in_specs=[vmem] * 10,
        out_specs=(vmem, vmem, vmem),
        cost_estimate=pl.CostEstimate(flops=flops,
                                      transcendentals=transcendentals,
                                      bytes_accessed=bytes_accessed),
    )(
        xo.astype(jnp.float32), xc.astype(jnp.float32),
        packed["gamma1"], packed["beta1"], packed["w1"], packed["b1"],
        packed["gamma2"], packed["beta2"], packed["w2"], packed["b2"],
    )
    # Strip lane padding; forward() returns (xc_logis, xo_logis, xco_logis).
    return out_c[:, :num_classes], out_o[:, :num_classes], out_co[:, :num_classes]


def make_params(key, hidden, num_classes):
    """Per-head params matching the shapes in Causal.__init__.

    Linear weights stored pre-transposed as [in, out] for x @ W.
    BatchNorm: weight=1, bias=0.0001 (module's init loop).
    """
    def linear(k, fan_in, fan_out):
        kw, kb = jax.random.split(k)
        bound = 1.0 / jnp.sqrt(fan_in)
        w = jax.random.uniform(kw, (fan_in, fan_out), jnp.float32, -bound, bound)
        b = jax.random.uniform(kb, (fan_out,), jnp.float32, -bound, bound)
        return w, b

    keys = jax.random.split(key, 6)
    params = {}
    for name, ks in zip(("c", "o", "co"), (keys[0:2], keys[2:4], keys[4:6])):
        w1, b1 = linear(ks[0], hidden, hidden)          # fc1_*
        w2, b2 = linear(ks[1], hidden, num_classes)     # fc2_*
        params[name] = dict(
            gamma1=jnp.ones((hidden,), jnp.float32),
            beta1=jnp.full((hidden,), 1e-4, jnp.float32),
            w1=w1, b1=b1,
            gamma2=jnp.ones((hidden,), jnp.float32),
            beta2=jnp.full((hidden,), 1e-4, jnp.float32),
            w2=w2, b2=b2,
        )
    return params


def pack_params(params, hidden, num_classes, c_pad=C_PAD):
    """One-time stacking (head axis 0=c, 1=o, 2=co), reshaping and lane-padding."""
    heads = ("c", "o", "co")

    def stack(name, shape):
        return jnp.stack([params[h][name] for h in heads]).reshape(shape)

    w2 = jnp.stack([params[h]["w2"] for h in heads])                    # [3, H, C]
    b2 = jnp.stack([params[h]["b2"] for h in heads]).reshape(3, 1, num_classes)
    w2_pad = jnp.zeros((3, hidden, c_pad), jnp.float32).at[:, :, :num_classes].set(w2)
    b2_pad = jnp.full((3, 1, c_pad), NEG_PAD, jnp.float32).at[:, :, :num_classes].set(b2)
    return dict(
        gamma1=stack("gamma1", (3, 1, hidden)),
        beta1=stack("beta1", (3, 1, hidden)),
        w1=jnp.stack([params[h]["w1"] for h in heads]),                 # [3, H, H]
        b1=stack("b1", (3, 1, hidden)),
        gamma2=stack("gamma2", (3, 1, hidden)),
        beta2=stack("beta2", (3, 1, hidden)),
        w2=w2_pad,                                                      # [3, H, C_PAD]
        b2=b2_pad,                                                      # [3, 1, C_PAD]
    )


# ---------------- pure-JAX reference (sanity check) ----------------
def _readout_ref(x, gamma1, beta1, w1, b1, gamma2, beta2, w2, b2):
    def bn(v, g, b):
        m = jnp.mean(v, axis=0, keepdims=True)
        var = jnp.mean((v - m) ** 2, axis=0, keepdims=True)
        return (v - m) / jnp.sqrt(var + BN_EPS) * g + b
    h = jnp.maximum(bn(x, gamma1, beta1) @ w1 + b1, 0.0)
    logits = bn(h, gamma2, beta2) @ w2 + b2
    return jax.nn.log_softmax(logits, axis=-1)


if __name__ == "__main__":
    HIDDEN = 32       # args.hidden
    NUM_CLASSES = 4
    B = 8             # number of graphs (rows of pooled embeddings)

    key = jax.random.PRNGKey(0)
    k_xo, k_xc, k_params = jax.random.split(key, 3)
    xo = jax.random.normal(k_xo, (B, HIDDEN), jnp.float32)
    xc = jax.random.normal(k_xc, (B, HIDDEN), jnp.float32)
    params = make_params(k_params, HIDDEN, NUM_CLASSES)
    packed = pack_params(params, HIDDEN, NUM_CLASSES)

    xc_logis, xo_logis, xco_logis = causal_forward(xo, xc, packed, NUM_CLASSES)
    jax.block_until_ready((xc_logis, xo_logis, xco_logis))

    # sanity check vs pure-JAX reference (unpadded params)
    xc_ref = _readout_ref(xc, **params["c"])
    xo_ref = _readout_ref(xo, **params["o"])
    xco_ref = _readout_ref((xo[:, None, :] + xc[None, :, :]).reshape(-1, HIDDEN),
                           **params["co"])
    assert xc_logis.shape == (B, NUM_CLASSES)
    assert xo_logis.shape == (B, NUM_CLASSES)
    assert xco_logis.shape == (B * B, NUM_CLASSES)
    assert jnp.allclose(xc_logis, xc_ref, atol=1e-4), "xc mismatch"
    assert jnp.allclose(xo_logis, xo_ref, atol=1e-4), "xo mismatch"
    assert jnp.allclose(xco_logis, xco_ref, atol=1e-4), "xco mismatch"

    print("KERNEL_OK")
</pallas_src>

<mosaic_0001>
module attributes {stable_mosaic.version = 11 : i64} {
  func.func @_causal_kernel(%arg0: memref<8x32xf32, #tpu.memory_space<vmem>>, %arg1: memref<8x32xf32, #tpu.memory_space<vmem>>, %arg2: memref<3x1x32xf32, #tpu.memory_space<vmem>>, %arg3: memref<3x1x32xf32, #tpu.memory_space<vmem>>, %arg4: memref<3x32x32xf32, #tpu.memory_space<vmem>>, %arg5: memref<3x1x32xf32, #tpu.memory_space<vmem>>, %arg6: memref<3x1x32xf32, #tpu.memory_space<vmem>>, %arg7: memref<3x1x32xf32, #tpu.memory_space<vmem>>, %arg8: memref<3x32x128xf32, #tpu.memory_space<vmem>>, %arg9: memref<3x1x128xf32, #tpu.memory_space<vmem>>, %arg10: memref<8x128xf32, #tpu.memory_space<vmem>>, %arg11: memref<8x128xf32, #tpu.memory_space<vmem>>, %arg12: memref<64x128xf32, #tpu.memory_space<vmem>>) attributes {dimension_semantics = [], scalar_prefetch = 0 : i64, scratch_operands = 0 : i64, tpu.core_type = #tpu.core_type<tc>} {
    %c0 = arith.constant 0 : index
    %c0_0 = arith.constant 0 : index
    %0 = vector.load %arg0[%c0, %c0_0] : memref<8x32xf32, #tpu.memory_space<vmem>>, vector<8x32xf32>
    %c0_1 = arith.constant 0 : index
    %c0_2 = arith.constant 0 : index
    %1 = vector.load %arg1[%c0_1, %c0_2] : memref<8x32xf32, #tpu.memory_space<vmem>>, vector<8x32xf32>
    %cst = arith.constant dense<0.000000e+00> : vector<32xf32>
    %2 = vector.multi_reduction <add>, %1, %cst [0] : vector<8x32xf32> to vector<32xf32>
    %3 = vector.shape_cast %2 : vector<32xf32> to vector<1x32xf32>
    %cst_3 = arith.constant 8.000000e+00 : f32
    %4 = vector.broadcast %cst_3 : f32 to vector<1x32xf32>
    %5 = arith.divf %3, %4 : vector<1x32xf32>
    %6 = vector.broadcast %5 : vector<1x32xf32> to vector<8x32xf32>
    %7 = arith.subf %1, %6 : vector<8x32xf32>
    %8 = vector.broadcast %5 : vector<1x32xf32> to vector<8x32xf32>
    %9 = arith.subf %1, %8 : vector<8x32xf32>
    %10 = arith.mulf %7, %9 : vector<8x32xf32>
    %cst_4 = arith.constant dense<0.000000e+00> : vector<32xf32>
    %11 = vector.multi_reduction <add>, %10, %cst_4 [0] : vector<8x32xf32> to vector<32xf32>
    %12 = vector.shape_cast %11 : vector<32xf32> to vector<1x32xf32>
    %cst_5 = arith.constant 8.000000e+00 : f32
    %13 = vector.broadcast %cst_5 : f32 to vector<1x32xf32>
    %14 = arith.divf %12, %13 : vector<1x32xf32>
    %15 = vector.broadcast %5 : vector<1x32xf32> to vector<8x32xf32>
    %16 = arith.subf %1, %15 : vector<8x32xf32>
    %cst_6 = arith.constant 9.99999974E-6 : f32
    %17 = vector.broadcast %cst_6 : f32 to vector<1x32xf32>
    %18 = arith.addf %14, %17 : vector<1x32xf32>
    %19 = math.rsqrt %18 : vector<1x32xf32>
    %20 = vector.broadcast %19 : vector<1x32xf32> to vector<8x32xf32>
    %21 = arith.mulf %16, %20 : vector<8x32xf32>
    %c0_7 = arith.constant 0 : index
    %c0_8 = arith.constant 0 : index
    %c0_9 = arith.constant 0 : index
    %22 = vector.load %arg2[%c0_7, %c0_8, %c0_9] : memref<3x1x32xf32, #tpu.memory_space<vmem>>, vector<1x1x32xf32>
    %23 = vector.shape_cast %22 : vector<1x1x32xf32> to vector<1x32xf32>
    %24 = vector.broadcast %23 : vector<1x32xf32> to vector<8x32xf32>
    %25 = arith.mulf %21, %24 : vector<8x32xf32>
    %c0_10 = arith.constant 0 : index
    %c0_11 = arith.constant 0 : index
    %c0_12 = arith.constant 0 : index
    %26 = vector.load %arg3[%c0_10, %c0_11, %c0_12] : memref<3x1x32xf32, #tpu.memory_space<vmem>>, vector<1x1x32xf32>
    %27 = vector.shape_cast %26 : vector<1x1x32xf32> to vector<1x32xf32>
    %28 = vector.broadcast %27 : vector<1x32xf32> to vector<8x32xf32>
    %29 = arith.addf %25, %28 : vector<8x32xf32>
    %c0_13 = arith.constant 0 : index
    %c0_14 = arith.constant 0 : index
    %c0_15 = arith.constant 0 : index
    %30 = vector.load %arg4[%c0_13, %c0_14, %c0_15] : memref<3x32x32xf32, #tpu.memory_space<vmem>>, vector<1x32x32xf32>
    %31 = vector.shape_cast %30 : vector<1x32x32xf32> to vector<32x32xf32>
    %cst_16 = arith.constant dense<0.000000e+00> : vector<8x32xf32>
    %32 = tpu.matmul %29, %31, %cst_16 {dimension_numbers = #tpu.dot_dimension_numbers<[1], [0], [0], [1], [0, 0, 1, 1], [], []>} : vector<8x32xf32>, vector<32x32xf32>, vector<8x32xf32> -> vector<8x32xf32>
    %c0_17 = arith.constant 0 : index
    %c0_18 = arith.constant 0 : index
    %c0_19 = arith.constant 0 : index
    %33 = vector.load %arg5[%c0_17, %c0_18, %c0_19] : memref<3x1x32xf32, #tpu.memory_space<vmem>>, vector<1x1x32xf32>
    %34 = vector.shape_cast %33 : vector<1x1x32xf32> to vector<1x32xf32>
    %35 = vector.broadcast %34 : vector<1x32xf32> to vector<8x32xf32>
    %36 = arith.addf %32, %35 : vector<8x32xf32>
    %cst_20 = arith.constant 0.000000e+00 : f32
    %37 = vector.broadcast %cst_20 : f32 to vector<8x32xf32>
    %38 = arith.maximumf %36, %37 : vector<8x32xf32>
    %cst_21 = arith.constant dense<0.000000e+00> : vector<32xf32>
    %39 = vector.multi_reduction <add>, %38, %cst_21 [0] : vector<8x32xf32> to vector<32xf32>
    %40 = vector.shape_cast %39 : vector<32xf32> to vector<1x32xf32>
    %cst_22 = arith.constant 8.000000e+00 : f32
    %41 = vector.broadcast %cst_22 : f32 to vector<1x32xf32>
    %42 = arith.divf %40, %41 : vector<1x32xf32>
    %43 = vector.broadcast %42 : vector<1x32xf32> to vector<8x32xf32>
    %44 = arith.subf %38, %43 : vector<8x32xf32>
    %45 = vector.broadcast %42 : vector<1x32xf32> to vector<8x32xf32>
    %46 = arith.subf %38, %45 : vector<8x32xf32>
    %47 = arith.mulf %44, %46 : vector<8x32xf32>
    %cst_23 = arith.constant dense<0.000000e+00> : vector<32xf32>
    %48 = vector.multi_reduction <add>, %47, %cst_23 [0] : vector<8x32xf32> to vector<32xf32>
    %49 = vector.shape_cast %48 : vector<32xf32> to vector<1x32xf32>
    %cst_24 = arith.constant 8.000000e+00 : f32
    %50 = vector.broadcast %cst_24 : f32 to vector<1x32xf32>
    %51 = arith.divf %49, %50 : vector<1x32xf32>
    %52 = vector.broadcast %42 : vector<1x32xf32> to vector<8x32xf32>
    %53 = arith.subf %38, %52 : vector<8x32xf32>
    %cst_25 = arith.constant 9.99999974E-6 : f32
    %54 = vector.broadcast %cst_25 : f32 to vector<1x32xf32>
    %55 = arith.addf %51, %54 : vector<1x32xf32>
    %56 = math.rsqrt %55 : vector<1x32xf32>
    %57 = vector.broadcast %56 : vector<1x32xf32> to vector<8x32xf32>
    %58 = arith.mulf %53, %57 : vector<8x32xf32>
    %c0_26 = arith.constant 0 : index
    %c0_27 = arith.constant 0 : index
    %c0_28 = arith.constant 0 : index
    %59 = vector.load %arg6[%c0_26, %c0_27, %c0_28] : memref<3x1x32xf32, #tpu.memory_space<vmem>>, vector<1x1x32xf32>
    %60 = vector.shape_cast %59 : vector<1x1x32xf32> to vector<1x32xf32>
    %61 = vector.broadcast %60 : vector<1x32xf32> to vector<8x32xf32>
    %62 = arith.mulf %58, %61 : vector<8x32xf32>
    %c0_29 = arith.constant 0 : index
    %c0_30 = arith.constant 0 : index
    %c0_31 = arith.constant 0 : index
    %63 = vector.load %arg7[%c0_29, %c0_30, %c0_31] : memref<3x1x32xf32, #tpu.memory_space<vmem>>, vector<1x1x32xf32>
    %64 = vector.shape_cast %63 : vector<1x1x32xf32> to vector<1x32xf32>
    %65 = vector.broadcast %64 : vector<1x32xf32> to vector<8x32xf32>
    %66 = arith.addf %62, %65 : vector<8x32xf32>
    %c0_32 = arith.constant 0 : index
    %c0_33 = arith.constant 0 : index
    %c0_34 = arith.constant 0 : index
    %67 = vector.load %arg8[%c0_32, %c0_33, %c0_34] : memref<3x32x128xf32, #tpu.memory_space<vmem>>, vector<1x32x128xf32>
    %68 = vector.shape_cast %67 : vector<1x32x128xf32> to vector<32x128xf32>
    %cst_35 = arith.constant dense<0.000000e+00> : vector<8x128xf32>
    %69 = tpu.matmul %66, %68, %cst_35 {dimension_numbers = #tpu.dot_dimension_numbers<[1], [0], [0], [1], [0, 0, 1, 1], [], []>} : vector<8x32xf32>, vector<32x128xf32>, vector<8x128xf32> -> vector<8x128xf32>
    %c0_36 = arith.constant 0 : index
    %c0_37 = arith.constant 0 : index
    %c0_38 = arith.constant 0 : index
    %70 = vector.load %arg9[%c0_36, %c0_37, %c0_38] : memref<3x1x128xf32, #tpu.memory_space<vmem>>, vector<1x1x128xf32>
    %71 = vector.shape_cast %70 : vector<1x1x128xf32> to vector<1x128xf32>
    %72 = vector.broadcast %71 : vector<1x128xf32> to vector<8x128xf32>
    %73 = arith.addf %69, %72 : vector<8x128xf32>
    %cst_39 = arith.constant dense<0xFF800000> : vector<8xf32>
    %74 = vector.multi_reduction <maximumf>, %73, %cst_39 [1] : vector<8x128xf32> to vector<8xf32>
    %75 = vector.shape_cast %74 : vector<8xf32> to vector<8x1xf32>
    %76 = vector.broadcast %75 : vector<8x1xf32> to vector<8x128xf32>
    %77 = arith.subf %73, %76 : vector<8x128xf32>
    %78 = math.exp %77 : vector<8x128xf32>
    %cst_40 = arith.constant dense<0.000000e+00> : vector<8xf32>
    %79 = vector.multi_reduction <add>, %78, %cst_40 [1] : vector<8x128xf32> to vector<8xf32>
    %80 = vector.shape_cast %79 : vector<8xf32> to vector<8x1xf32>
    %81 = math.log %80 : vector<8x1xf32>
    %82 = vector.broadcast %81 : vector<8x1xf32> to vector<8x128xf32>
    %83 = arith.subf %77, %82 : vector<8x128xf32>
    %c0_41 = arith.constant 0 : index
    %c0_42 = arith.constant 0 : index
    %84 = vector.load %arg10[%c0_41, %c0_42] : memref<8x128xf32, #tpu.memory_space<vmem>>, vector<8x128xf32>
    tpu.vector_store %arg10[%c0_41, %c0_42], %83 {strides = array<i32>} : memref<8x128xf32, #tpu.memory_space<vmem>>, vector<8x128xf32>,
    %cst_43 = arith.constant dense<0.000000e+00> : vector<32xf32>
    %85 = vector.multi_reduction <add>, %0, %cst_43 [0] : vector<8x32xf32> to vector<32xf32>
    %86 = vector.shape_cast %85 : vector<32xf32> to vector<1x32xf32>
    %cst_44 = arith.constant 8.000000e+00 : f32
    %87 = vector.broadcast %cst_44 : f32 to vector<1x32xf32>
    %88 = arith.divf %86, %87 : vector<1x32xf32>
    %89 = vector.broadcast %88 : vector<1x32xf32> to vector<8x32xf32>
    %90 = arith.subf %0, %89 : vector<8x32xf32>
    %91 = vector.broadcast %88 : vector<1x32xf32> to vector<8x32xf32>
    %92 = arith.subf %0, %91 : vector<8x32xf32>
    %93 = arith.mulf %90, %92 : vector<8x32xf32>
    %cst_45 = arith.constant dense<0.000000e+00> : vector<32xf32>
    %94 = vector.multi_reduction <add>, %93, %cst_45 [0] : vector<8x32xf32> to vector<32xf32>
    %95 = vector.shape_cast %94 : vector<32xf32> to vector<1x32xf32>
    %cst_46 = arith.constant 8.000000e+00 : f32
    %96 = vector.broadcast %cst_46 : f32 to vector<1x32xf32>
    %97 = arith.divf %95, %96 : vector<1x32xf32>
    %98 = vector.broadcast %88 : vector<1x32xf32> to vector<8x32xf32>
    %99 = arith.subf %0, %98 : vector<8x32xf32>
    %cst_47 = arith.constant 9.99999974E-6 : f32
    %100 = vector.broadcast %cst_47 : f32 to vector<1x32xf32>
    %101 = arith.addf %97, %100 : vector<1x32xf32>
    %102 = math.rsqrt %101 : vector<1x32xf32>
    %103 = vector.broadcast %102 : vector<1x32xf32> to vector<8x32xf32>
    %104 = arith.mulf %99, %103 : vector<8x32xf32>
    %c1 = arith.constant 1 : index
    %c0_48 = arith.constant 0 : index
    %c0_49 = arith.constant 0 : index
    %105 = vector.load %arg2[%c1, %c0_48, %c0_49] : memref<3x1x32xf32, #tpu.memory_space<vmem>>, vector<1x1x32xf32>
    %106 = vector.shape_cast %105 : vector<1x1x32xf32> to vector<1x32xf32>
    %107 = vector.broadcast %106 : vector<1x32xf32> to vector<8x32xf32>
    %108 = arith.mulf %104, %107 : vector<8x32xf32>
    %c1_50 = arith.constant 1 : index
    %c0_51 = arith.constant 0 : index
    %c0_52 = arith.constant 0 : index
    %109 = vector.load %arg3[%c1_50, %c0_51, %c0_52] : memref<3x1x32xf32, #tpu.memory_space<vmem>>, vector<1x1x32xf32>
    %110 = vector.shape_cast %109 : vector<1x1x32xf32> to vector<1x32xf32>
    %111 = vector.broadcast %110 : vector<1x32xf32> to vector<8x32xf32>
    %112 = arith.addf %108, %111 : vector<8x32xf32>
    %c1_53 = arith.constant 1 : index
    %c0_54 = arith.constant 0 : index
    %c0_55 = arith.constant 0 : index
    %113 = vector.load %arg4[%c1_53, %c0_54, %c0_55] : memref<3x32x32xf32, #tpu.memory_space<vmem>>, vector<1x32x32xf32>
    %114 = vector.shape_cast %113 : vector<1x32x32xf32> to vector<32x32xf32>
    %cst_56 = arith.constant dense<0.000000e+00> : vector<8x32xf32>
    %115 = tpu.matmul %112, %114, %cst_56 {dimension_numbers = #tpu.dot_dimension_numbers<[1], [0], [0], [1], [0, 0, 1, 1], [], []>} : vector<8x32xf32>, vector<32x32xf32>, vector<8x32xf32> -> vector<8x32xf32>
    %c1_57 = arith.constant 1 : index
    %c0_58 = arith.constant 0 : index
    %c0_59 = arith.constant 0 : index
    %116 = vector.load %arg5[%c1_57, %c0_58, %c0_59] : memref<3x1x32xf32, #tpu.memory_space<vmem>>, vector<1x1x32xf32>
    %117 = vector.shape_cast %116 : vector<1x1x32xf32> to vector<1x32xf32>
    %118 = vector.broadcast %117 : vector<1x32xf32> to vector<8x32xf32>
    %119 = arith.addf %115, %118 : vector<8x32xf32>
    %cst_60 = arith.constant 0.000000e+00 : f32
    %120 = vector.broadcast %cst_60 : f32 to vector<8x32xf32>
    %121 = arith.maximumf %119, %120 : vector<8x32xf32>
    %cst_61 = arith.constant dense<0.000000e+00> : vector<32xf32>
    %122 = vector.multi_reduction <add>, %121, %cst_61 [0] : vector<8x32xf32> to vector<32xf32>
    %123 = vector.shape_cast %122 : vector<32xf32> to vector<1x32xf32>
    %cst_62 = arith.constant 8.000000e+00 : f32
    %124 = vector.broadcast %cst_62 : f32 to vector<1x32xf32>
    %125 = arith.divf %123, %124 : vector<1x32xf32>
    %126 = vector.broadcast %125 : vector<1x32xf32> to vector<8x32xf32>
    %127 = arith.subf %121, %126 : vector<8x32xf32>
    %128 = vector.broadcast %125 : vector<1x32xf32> to vector<8x32xf32>
    %129 = arith.subf %121, %128 : vector<8x32xf32>
    %130 = arith.mulf %127, %129 : vector<8x32xf32>
    %cst_63 = arith.constant dense<0.000000e+00> : vector<32xf32>
    %131 = vector.multi_reduction <add>, %130, %cst_63 [0] : vector<8x32xf32> to vector<32xf32>
    %132 = vector.shape_cast %131 : vector<32xf32> to vector<1x32xf32>
    %cst_64 = arith.constant 8.000000e+00 : f32
    %133 = vector.broadcast %cst_64 : f32 to vector<1x32xf32>
    %134 = arith.divf %132, %133 : vector<1x32xf32>
    %135 = vector.broadcast %125 : vector<1x32xf32> to vector<8x32xf32>
    %136 = arith.subf %121, %135 : vector<8x32xf32>
    %cst_65 = arith.constant 9.99999974E-6 : f32
    %137 = vector.broadcast %cst_65 : f32 to vector<1x32xf32>
    %138 = arith.addf %134, %137 : vector<1x32xf32>
    %139 = math.rsqrt %138 : vector<1x32xf32>
    %140 = vector.broadcast %139 : vector<1x32xf32> to vector<8x32xf32>
    %141 = arith.mulf %136, %140 : vector<8x32xf32>
    %c1_66 = arith.constant 1 : index
    %c0_67 = arith.constant 0 : index
    %c0_68 = arith.constant 0 : index
    %142 = vector.load %arg6[%c1_66, %c0_67, %c0_68] : memref<3x1x32xf32, #tpu.memory_space<vmem>>, vector<1x1x32xf32>
    %143 = vector.shape_cast %142 : vector<1x1x32xf32> to vector<1x32xf32>
    %144 = vector.broadcast %143 : vector<1x32xf32> to vector<8x32xf32>
    %145 = arith.mulf %141, %144 : vector<8x32xf32>
    %c1_69 = arith.constant 1 : index
    %c0_70 = arith.constant 0 : index
    %c0_71 = arith.constant 0 : index
    %146 = vector.load %arg7[%c1_69, %c0_70, %c0_71] : memref<3x1x32xf32, #tpu.memory_space<vmem>>, vector<1x1x32xf32>
    %147 = vector.shape_cast %146 : vector<1x1x32xf32> to vector<1x32xf32>
    %148 = vector.broadcast %147 : vector<1x32xf32> to vector<8x32xf32>
    %149 = arith.addf %145, %148 : vector<8x32xf32>
    %c1_72 = arith.constant 1 : index
    %c0_73 = arith.constant 0 : index
    %c0_74 = arith.constant 0 : index
    %150 = vector.load %arg8[%c1_72, %c0_73, %c0_74] : memref<3x32x128xf32, #tpu.memory_space<vmem>>, vector<1x32x128xf32>
    %151 = vector.shape_cast %150 : vector<1x32x128xf32> to vector<32x128xf32>
    %cst_75 = arith.constant dense<0.000000e+00> : vector<8x128xf32>
    %152 = tpu.matmul %149, %151, %cst_75 {dimension_numbers = #tpu.dot_dimension_numbers<[1], [0], [0], [1], [0, 0, 1, 1], [], []>} : vector<8x32xf32>, vector<32x128xf32>, vector<8x128xf32> -> vector<8x128xf32>
    %c1_76 = arith.constant 1 : index
    %c0_77 = arith.constant 0 : index
    %c0_78 = arith.constant 0 : index
    %153 = vector.load %arg9[%c1_76, %c0_77, %c0_78] : memref<3x1x128xf32, #tpu.memory_space<vmem>>, vector<1x1x128xf32>
    %154 = vector.shape_cast %153 : vector<1x1x128xf32> to vector<1x128xf32>
    %155 = vector.broadcast %154 : vector<1x128xf32> to vector<8x128xf32>
    %156 = arith.addf %152, %155 : vector<8x128xf32>
    %cst_79 = arith.constant dense<0xFF800000> : vector<8xf32>
    %157 = vector.multi_reduction <maximumf>, %156, %cst_79 [1] : vector<8x128xf32> to vector<8xf32>
    %158 = vector.shape_cast %157 : vector<8xf32> to vector<8x1xf32>
    %159 = vector.broadcast %158 : vector<8x1xf32> to vector<8x128xf32>
    %160 = arith.subf %156, %159 : vector<8x128xf32>
    %161 = math.exp %160 : vector<8x128xf32>
    %cst_80 = arith.constant dense<0.000000e+00> : vector<8xf32>
    %162 = vector.multi_reduction <add>, %161, %cst_80 [1] : vector<8x128xf32> to vector<8xf32>
    %163 = vector.shape_cast %162 : vector<8xf32> to vector<8x1xf32>
    %164 = math.log %163 : vector<8x1xf32>
    %165 = vector.broadcast %164 : vector<8x1xf32> to vector<8x128xf32>
    %166 = arith.subf %160, %165 : vector<8x128xf32>
    %c0_81 = arith.constant 0 : index
    %c0_82 = arith.constant 0 : index
    %167 = vector.load %arg11[%c0_81, %c0_82] : memref<8x128xf32, #tpu.memory_space<vmem>>, vector<8x128xf32>
    tpu.vector_store %arg11[%c0_81, %c0_82], %166 {strides = array<i32>} : memref<8x128xf32, #tpu.memory_space<vmem>>, vector<8x128xf32>,
    %168 = vector.extract_strided_slice %0 {offsets = [0, 0], sizes = [1, 32], strides = [1, 1]} : vector<8x32xf32> to vector<1x32xf32>
    %169 = vector.broadcast %168 : vector<1x32xf32> to vector<8x32xf32>
    %170 = arith.addf %169, %1 : vector<8x32xf32>
    %171 = vector.extract_strided_slice %0 {offsets = [1, 0], sizes = [1, 32], strides = [1, 1]} : vector<8x32xf32> to vector<1x32xf32>
    %172 = vector.broadcast %171 : vector<1x32xf32> to vector<8x32xf32>
    %173 = arith.addf %172, %1 : vector<8x32xf32>
    %174 = vector.extract_strided_slice %0 {offsets = [2, 0], sizes = [1, 32], strides = [1, 1]} : vector<8x32xf32> to vector<1x32xf32>
    %175 = vector.broadcast %174 : vector<1x32xf32> to vector<8x32xf32>
    %176 = arith.addf %175, %1 : vector<8x32xf32>
    %177 = vector.extract_strided_slice %0 {offsets = [3, 0], sizes = [1, 32], strides = [1, 1]} : vector<8x32xf32> to vector<1x32xf32>
    %178 = vector.broadcast %177 : vector<1x32xf32> to vector<8x32xf32>
    %179 = arith.addf %178, %1 : vector<8x32xf32>
    %180 = vector.extract_strided_slice %0 {offsets = [4, 0], sizes = [1, 32], strides = [1, 1]} : vector<8x32xf32> to vector<1x32xf32>
    %181 = vector.broadcast %180 : vector<1x32xf32> to vector<8x32xf32>
    %182 = arith.addf %181, %1 : vector<8x32xf32>
    %183 = vector.extract_strided_slice %0 {offsets = [5, 0], sizes = [1, 32], strides = [1, 1]} : vector<8x32xf32> to vector<1x32xf32>
    %184 = vector.broadcast %183 : vector<1x32xf32> to vector<8x32xf32>
    %185 = arith.addf %184, %1 : vector<8x32xf32>
    %186 = vector.extract_strided_slice %0 {offsets = [6, 0], sizes = [1, 32], strides = [1, 1]} : vector<8x32xf32> to vector<1x32xf32>
    %187 = vector.broadcast %186 : vector<1x32xf32> to vector<8x32xf32>
    %188 = arith.addf %187, %1 : vector<8x32xf32>
    %189 = vector.extract_strided_slice %0 {offsets = [7, 0], sizes = [1, 32], strides = [1, 1]} : vector<8x32xf32> to vector<1x32xf32>
    %190 = vector.broadcast %189 : vector<1x32xf32> to vector<8x32xf32>
    %191 = arith.addf %190, %1 : vector<8x32xf32>
    %192 = tpu.concatenate %170, %173, %176, %179, %182, %185, %188, %191 in 0 : vector<8x32xf32>, vector<8x32xf32>, vector<8x32xf32>, vector<8x32xf32>, vector<8x32xf32>, vector<8x32xf32>, vector<8x32xf32>, vector<8x32xf32> -> vector<64x32xf32>
    %cst_83 = arith.constant dense<0.000000e+00> : vector<32xf32>
    %193 = vector.multi_reduction <add>, %192, %cst_83 [0] : vector<64x32xf32> to vector<32xf32>
    %194 = vector.shape_cast %193 : vector<32xf32> to vector<1x32xf32>
    %cst_84 = arith.constant 6.400000e+01 : f32
    %195 = vector.broadcast %cst_84 : f32 to vector<1x32xf32>
    %196 = arith.divf %194, %195 : vector<1x32xf32>
    %197 = vector.broadcast %196 : vector<1x32xf32> to vector<64x32xf32>
    %198 = arith.subf %192, %197 : vector<64x32xf32>
    %199 = vector.broadcast %196 : vector<1x32xf32> to vector<64x32xf32>
    %200 = arith.subf %192, %199 : vector<64x32xf32>
    %201 = arith.mulf %198, %200 : vector<64x32xf32>
    %cst_85 = arith.constant dense<0.000000e+00> : vector<32xf32>
    %202 = vector.multi_reduction <add>, %201, %cst_85 [0] : vector<64x32xf32> to vector<32xf32>
    %203 = vector.shape_cast %202 : vector<32xf32> to vector<1x32xf32>
    %cst_86 = arith.constant 6.400000e+01 : f32
    %204 = vector.broadcast %cst_86 : f32 to vector<1x32xf32>
    %205 = arith.divf %203, %204 : vector<1x32xf32>
    %206 = vector.broadcast %196 : vector<1x32xf32> to vector<64x32xf32>
    %207 = arith.subf %192, %206 : vector<64x32xf32>
    %cst_87 = arith.constant 9.99999974E-6 : f32
    %208 = vector.broadcast %cst_87 : f32 to vector<1x32xf32>
    %209 = arith.addf %205, %208 : vector<1x32xf32>
    %210 = math.rsqrt %209 : vector<1x32xf32>
    %211 = vector.broadcast %210 : vector<1x32xf32> to vector<64x32xf32>
    %212 = arith.mulf %207, %211 : vector<64x32xf32>
    %c2 = arith.constant 2 : index
    %c0_88 = arith.constant 0 : index
    %c0_89 = arith.constant 0 : index
    %213 = vector.load %arg2[%c2, %c0_88, %c0_89] : memref<3x1x32xf32, #tpu.memory_space<vmem>>, vector<1x1x32xf32>
    %214 = vector.shape_cast %213 : vector<1x1x32xf32> to vector<1x32xf32>
    %215 = vector.broadcast %214 : vector<1x32xf32> to vector<64x32xf32>
    %216 = arith.mulf %212, %215 : vector<64x32xf32>
    %c2_90 = arith.constant 2 : index
    %c0_91 = arith.constant 0 : index
    %c0_92 = arith.constant 0 : index
    %217 = vector.load %arg3[%c2_90, %c0_91, %c0_92] : memref<3x1x32xf32, #tpu.memory_space<vmem>>, vector<1x1x32xf32>
    %218 = vector.shape_cast %217 : vector<1x1x32xf32> to vector<1x32xf32>
    %219 = vector.broadcast %218 : vector<1x32xf32> to vector<64x32xf32>
    %220 = arith.addf %216, %219 : vector<64x32xf32>
    %c2_93 = arith.constant 2 : index
    %c0_94 = arith.constant 0 : index
    %c0_95 = arith.constant 0 : index
    %221 = vector.load %arg4[%c2_93, %c0_94, %c0_95] : memref<3x32x32xf32, #tpu.memory_space<vmem>>, vector<1x32x32xf32>
    %222 = vector.shape_cast %221 : vector<1x32x32xf32> to vector<32x32xf32>
    %cst_96 = arith.constant dense<0.000000e+00> : vector<64x32xf32>
    %223 = tpu.matmul %220, %222, %cst_96 {dimension_numbers = #tpu.dot_dimension_numbers<[1], [0], [0], [1], [0, 0, 1, 1], [], []>} : vector<64x32xf32>, vector<32x32xf32>, vector<64x32xf32> -> vector<64x32xf32>
    %c2_97 = arith.constant 2 : index
    %c0_98 = arith.constant 0 : index
    %c0_99 = arith.constant 0 : index
    %224 = vector.load %arg5[%c2_97, %c0_98, %c0_99] : memref<3x1x32xf32, #tpu.memory_space<vmem>>, vector<1x1x32xf32>
    %225 = vector.shape_cast %224 : vector<1x1x32xf32> to vector<1x32xf32>
    %226 = vector.broadcast %225 : vector<1x32xf32> to vector<64x32xf32>
    %227 = arith.addf %223, %226 : vector<64x32xf32>
    %cst_100 = arith.constant 0.000000e+00 : f32
    %228 = vector.broadcast %cst_100 : f32 to vector<64x32xf32>
    %229 = arith.maximumf %227, %228 : vector<64x32xf32>
    %cst_101 = arith.constant dense<0.000000e+00> : vector<32xf32>
    %230 = vector.multi_reduction <add>, %229, %cst_101 [0] : vector<64x32xf32> to vector<32xf32>
    %231 = vector.shape_cast %230 : vector<32xf32> to vector<1x32xf32>
    %cst_102 = arith.constant 6.400000e+01 : f32
    %232 = vector.broadcast %cst_102 : f32 to vector<1x32xf32>
    %233 = arith.divf %231, %232 : vector<1x32xf32>
    %234 = vector.broadcast %233 : vector<1x32xf32> to vector<64x32xf32>
    %235 = arith.subf %229, %234 : vector<64x32xf32>
    %236 = vector.broadcast %233 : vector<1x32xf32> to vector<64x32xf32>
    %237 = arith.subf %229, %236 : vector<64x32xf32>
    %238 = arith.mulf %235, %237 : vector<64x32xf32>
    %cst_103 = arith.constant dense<0.000000e+00> : vector<32xf32>
    %239 = vector.multi_reduction <add>, %238, %cst_103 [0] : vector<64x32xf32> to vector<32xf32>
    %240 = vector.shape_cast %239 : vector<32xf32> to vector<1x32xf32>
    %cst_104 = arith.constant 6.400000e+01 : f32
    %241 = vector.broadcast %cst_104 : f32 to vector<1x32xf32>
    %242 = arith.divf %240, %241 : vector<1x32xf32>
    %243 = vector.broadcast %233 : vector<1x32xf32> to vector<64x32xf32>
    %244 = arith.subf %229, %243 : vector<64x32xf32>
    %cst_105 = arith.constant 9.99999974E-6 : f32
    %245 = vector.broadcast %cst_105 : f32 to vector<1x32xf32>
    %246 = arith.addf %242, %245 : vector<1x32xf32>
    %247 = math.rsqrt %246 : vector<1x32xf32>
    %248 = vector.broadcast %247 : vector<1x32xf32> to vector<64x32xf32>
    %249 = arith.mulf %244, %248 : vector<64x32xf32>
    %c2_106 = arith.constant 2 : index
    %c0_107 = arith.constant 0 : index
    %c0_108 = arith.constant 0 : index
    %250 = vector.load %arg6[%c2_106, %c0_107, %c0_108] : memref<3x1x32xf32, #tpu.memory_space<vmem>>, vector<1x1x32xf32>
    %251 = vector.shape_cast %250 : vector<1x1x32xf32> to vector<1x32xf32>
    %252 = vector.broadcast %251 : vector<1x32xf32> to vector<64x32xf32>
    %253 = arith.mulf %249, %252 : vector<64x32xf32>
    %c2_109 = arith.constant 2 : index
    %c0_110 = arith.constant 0 : index
    %c0_111 = arith.constant 0 : index
    %254 = vector.load %arg7[%c2_109, %c0_110, %c0_111] : memref<3x1x32xf32, #tpu.memory_space<vmem>>, vector<1x1x32xf32>
    %255 = vector.shape_cast %254 : vector<1x1x32xf32> to vector<1x32xf32>
    %256 = vector.broadcast %255 : vector<1x32xf32> to vector<64x32xf32>
    %257 = arith.addf %253, %256 : vector<64x32xf32>
    %c2_112 = arith.constant 2 : index
    %c0_113 = arith.constant 0 : index
    %c0_114 = arith.constant 0 : index
    %258 = vector.load %arg8[%c2_112, %c0_113, %c0_114] : memref<3x32x128xf32, #tpu.memory_space<vmem>>, vector<1x32x128xf32>
    %259 = vector.shape_cast %258 : vector<1x32x128xf32> to vector<32x128xf32>
    %cst_115 = arith.constant dense<0.000000e+00> : vector<64x128xf32>
    %260 = tpu.matmul %257, %259, %cst_115 {dimension_numbers = #tpu.dot_dimension_numbers<[1], [0], [0], [1], [0, 0, 1, 1], [], []>} : vector<64x32xf32>, vector<32x128xf32>, vector<64x128xf32> -> vector<64x128xf32>
    %c2_116 = arith.constant 2 : index
    %c0_117 = arith.constant 0 : index
    %c0_118 = arith.constant 0 : index
    %261 = vector.load %arg9[%c2_116, %c0_117, %c0_118] : memref<3x1x128xf32, #tpu.memory_space<vmem>>, vector<1x1x128xf32>
    %262 = vector.shape_cast %261 : vector<1x1x128xf32> to vector<1x128xf32>
    %263 = vector.broadcast %262 : vector<1x128xf32> to vector<64x128xf32>
    %264 = arith.addf %260, %263 : vector<64x128xf32>
    %cst_119 = arith.constant dense<0xFF800000> : vector<64xf32>
    %265 = vector.multi_reduction <maximumf>, %264, %cst_119 [1] : vector<64x128xf32> to vector<64xf32>
    %266 = vector.shape_cast %265 : vector<64xf32> to vector<64x1xf32>
    %267 = vector.broadcast %266 : vector<64x1xf32> to vector<64x128xf32>
    %268 = arith.subf %264, %267 : vector<64x128xf32>
    %269 = math.exp %268 : vector<64x128xf32>
    %cst_120 = arith.constant dense<0.000000e+00> : vector<64xf32>
    %270 = vector.multi_reduction <add>, %269, %cst_120 [1] : vector<64x128xf32> to vector<64xf32>
    %271 = vector.shape_cast %270 : vector<64xf32> to vector<64x1xf32>
    %272 = math.log %271 : vector<64x1xf32>
    %273 = vector.broadcast %272 : vector<64x1xf32> to vector<64x128xf32>
    %274 = arith.subf %268, %273 : vector<64x128xf32>
    %c0_121 = arith.constant 0 : index
    %c0_122 = arith.constant 0 : index
    %275 = vector.load %arg12[%c0_121, %c0_122] : memref<64x128xf32, #tpu.memory_space<vmem>>, vector<64x128xf32>
    tpu.vector_store %arg12[%c0_121, %c0_122], %274 {strides = array<i32>} : memref<64x128xf32, #tpu.memory_space<vmem>>, vector<64x128xf32>,
    return
  }
}

</mosaic_0001>

<llo_original>
// kernel: tpu_custom_call.1
$region0: #{tpu_custom_call.1}
  #allocation0 [shape = 'u32[]', space=smem, size = 0x4, offset = 0x4, fixed_abs, tag = 'smem constant byte address 0x4 - core index']
  #allocation1 [shape = 'u32[144,128]{1,0:T(1,128)}', space=vmem, size = 0x12000, scoped, tag = 'internal scratch']
  %s0 = inlined_call_operand.hbm [shape: f32[8,32], index: 0, kind: input, shape index: {}]
  %s1 = inlined_call_operand.hbm [shape: f32[8,32], index: 1, kind: input, shape index: {}]
  %s2 = inlined_call_operand.vmem [shape: f32[3,1,32], index: 2, kind: input, shape index: {}]
  %s3 = inlined_call_operand.hbm [shape: f32[3,1,32], index: 3, kind: input, shape index: {}]
  %s4 = inlined_call_operand.hbm [shape: f32[3,32,32], index: 4, kind: input, shape index: {}]
  %s5 = inlined_call_operand.vmem [shape: f32[3,1,32], index: 5, kind: input, shape index: {}]
  %s6 = inlined_call_operand.vmem [shape: f32[3,1,32], index: 6, kind: input, shape index: {}]
  %s7 = inlined_call_operand.vmem [shape: f32[3,1,32], index: 7, kind: input, shape index: {}]
  %s8 = inlined_call_operand.hbm [shape: f32[3,32,128], index: 8, kind: input, shape index: {}]
  %s9 = inlined_call_operand.vmem [shape: f32[3,1,128], index: 9, kind: input, shape index: {}]
  %s10 = inlined_call_operand.hbm [shape: f32[8,128], index: 10, kind: output, shape index: {0}]
  %s11 = inlined_call_operand.hbm [shape: f32[8,128], index: 11, kind: output, shape index: {1}]
  %s12 = inlined_call_operand.hbm [shape: f32[64,128], index: 12, kind: output, shape index: {2}]
  %13 = xla_tuple %s10, %s11, %s12
  %s14 = sld [smem:[#allocation0]]
  $region86: #{tpu_custom_call.1} parent=0
    _
  %s16 = ssub.s32 1, %s14
  %s17 = scalar_select 0, %s16, %s14
  $region1: #{tpu_custom_call.1} parent=0
    #allocation2 [shape = 'u8[4096]{0}', space=vmem, size = 0x1000, scoped, tag = 'input window, operand 0, single buffered']
    #allocation3 [shape = 's32[1]{0}', space=sflag, size = 0x4, scoped, tag = 'scoped memory for tpu_custom_call.1']
    #allocation4 [shape = 's32[1]{0}', space=sflag, size = 0x4, scoped, tag = 'scoped memory for tpu_custom_call.1']
    #allocation5 [shape = 'u8[4096]{0}', space=vmem, size = 0x1000, scoped, tag = 'input window, operand 1, single buffered']
    #allocation6 [shape = 's32[1]{0}', space=sflag, size = 0x4, scoped, tag = 'scoped memory for tpu_custom_call.1']
    #allocation7 [shape = 'u8[1536]{0}', space=vmem, size = 0x800, scoped, tag = 'input window, operand 3, single buffered']
    #allocation8 [shape = 'u8[49152]{0}', space=vmem, size = 0xc000, scoped, tag = 'input window, operand 4, single buffered']
    #allocation9 [shape = 's32[1]{0}', space=sflag, size = 0x4, scoped, tag = 'scoped memory for tpu_custom_call.1']
    #allocation10 [shape = 'u8[49152]{0}', space=vmem, size = 0xc000, scoped, tag = 'input window, operand 8, single buffered']
    #allocation11 [shape = 'u8[4096]{0}', space=vmem, size = 0x1000, scoped, tag = 'output window, operand 0, single buffered']
    #allocation12 [shape = 'u8[4096]{0}', space=vmem, size = 0x1000, scoped, tag = 'output window, operand 1, single buffered']
    #allocation13 [shape = 's32[1]{0}', space=sflag, size = 0x4, scoped, tag = 'scoped memory for tpu_custom_call.1']
    #allocation14 [shape = 'u8[32768]{0}', space=vmem, size = 0x8000, scoped, tag = 'output window, operand 2, single buffered']
    %18 = vsyncpa [#allocation3], 0
    %19 = vsyncpa [#allocation6], 0
    %20 = vsyncpa [#allocation9], 0
    %21 = vsyncpa [#allocation4], 0
    %22 = vsyncpa [#allocation13], 0
    // Predicated region
    $region2: #{tpu_custom_call.1} parent=1 // pred_check
      _
    $region3: #{tpu_custom_call.1} parent=1 // pred_check_branch
      %24 = sbr.rel (0) target = $region5
    $region4: #{tpu_custom_call.1} parent=1 // pred_region
      %s26 = ssub.s32 128, 128
      %27 = vsyncadd [#allocation3], %s26
      %s29 = sshll.u32 [#allocation2], 4
      %s30 = int_to_ptr.vmem [resolvable:$true] %s29
      %32 = dma.hbm_to_vmem [thread:$0]  %s0, 128, %s30, [#allocation3]
    $region5: #{tpu_custom_call.1} parent=1 // pred_fallthru
      _
    // Predicated region
    $region6: #{tpu_custom_call.1} parent=1 // pred_check
      _
    $region7: #{tpu_custom_call.1} parent=1 // pred_check_branch
      %34 = sbr.rel (0) target = $region9
    $region8: #{tpu_custom_call.1} parent=1 // pred_region
      %s36 = ssub.s32 128, 128
      %37 = vsyncadd [#allocation6], %s36
      %s39 = sshll.u32 [#allocation5], 4
      %s40 = int_to_ptr.vmem [resolvable:$true] %s39
      %42 = dma.hbm_to_vmem [thread:$0]  %s1, 128, %s40, [#allocation6]
    $region9: #{tpu_custom_call.1} parent=1 // pred_fallthru
      _
    // Predicated region
    $region10: #{tpu_custom_call.1} parent=1 // pred_check
      _
    $region11: #{tpu_custom_call.1} parent=1 // pred_check_branch
      %44 = sbr.rel (0) target = $region13
    $region12: #{tpu_custom_call.1} parent=1 // pred_region
      _
    $region13: #{tpu_custom_call.1} parent=1 // pred_fallthru
      _
    // Predicated region
    $region14: #{tpu_custom_call.1} parent=1 // pred_check
      _
    $region15: #{tpu_custom_call.1} parent=1 // pred_check_branch
      %46 = sbr.rel (0) target = $region17
    $region16: #{tpu_custom_call.1} parent=1 // pred_region
      %s48 = ssub.s32 48, 48
      %49 = vsyncadd [#allocation6], %s48
      %s50 = sshll.u32 [#allocation7], 4
      %s51 = int_to_ptr.vmem [resolvable:$true] %s50
      %56 = dma.hbm_to_vmem [thread:$0]  %s3, 48, %s51, [#allocation6], 16, 16, 1
    $region17: #{tpu_custom_call.1} parent=1 // pred_fallthru
      _
    // Predicated region
    $region18: #{tpu_custom_call.1} parent=1 // pred_check
      _
    $region19: #{tpu_custom_call.1} parent=1 // pred_check_branch
      %58 = sbr.rel (0) target = $region21
    $region20: #{tpu_custom_call.1} parent=1 // pred_region
      %s60 = ssub.s32 1536, 1536
      %61 = vsyncadd [#allocation9], %s60
      %s62 = sshll.u32 [#allocation8], 4
      %s63 = int_to_ptr.vmem [resolvable:$true] %s62
      %68 = dma.hbm_to_vmem [thread:$0]  %s4, 1536, %s63, [#allocation9], 128, 128, 8
    $region21: #{tpu_custom_call.1} parent=1 // pred_fallthru
      _
    // Predicated region
    $region22: #{tpu_custom_call.1} parent=1 // pred_check
      _
    $region23: #{tpu_custom_call.1} parent=1 // pred_check_branch
      %70 = sbr.rel (0) target = $region25
    $region24: #{tpu_custom_call.1} parent=1 // pred_region
      _
    $region25: #{tpu_custom_call.1} parent=1 // pred_fallthru
      _
    // Predicated region
    $region26: #{tpu_custom_call.1} parent=1 // pred_check
      _
    $region27: #{tpu_custom_call.1} parent=1 // pred_check_branch
      %72 = sbr.rel (0) target = $region29
    $region28: #{tpu_custom_call.1} parent=1 // pred_region
      _
    $region29: #{tpu_custom_call.1} parent=1 // pred_fallthru
      _
    // Predicated region
    $region30: #{tpu_custom_call.1} parent=1 // pred_check
      _
    $region31: #{tpu_custom_call.1} parent=1 // pred_check_branch
      %74 = sbr.rel (0) target = $region33
    $region32: #{tpu_custom_call.1} parent=1 // pred_region
      _
    $region33: #{tpu_custom_call.1} parent=1 // pred_fallthru
      _
    // Predicated region
    $region34: #{tpu_custom_call.1} parent=1 // pred_check
      _
    $region35: #{tpu_custom_call.1} parent=1 // pred_check_branch
      %76 = sbr.rel (0) target = $region37
    $region36: #{tpu_custom_call.1} parent=1 // pred_region
      %s78 = ssub.s32 1536, 1536
      %79 = vsyncadd [#allocation9], %s78
      %s80 = sshll.u32 [#allocation10], 4
      %s81 = int_to_ptr.vmem [resolvable:$true] %s80
      %86 = dma.hbm_to_vmem [thread:$0]  %s8, 1536, %s81, [#allocation9], 128, 128, 8
    $region37: #{tpu_custom_call.1} parent=1 // pred_fallthru
      _
    // Predicated region
    $region38: #{tpu_custom_call.1} parent=1 // pred_check
      _
    $region39: #{tpu_custom_call.1} parent=1 // pred_check_branch
      %88 = sbr.rel (0) target = $region41
    $region40: #{tpu_custom_call.1} parent=1 // pred_region
      _
    $region41: #{tpu_custom_call.1} parent=1 // pred_fallthru
      _
    // Predicated region
    $region42: #{tpu_custom_call.1} parent=1 // pred_check
      _
    $region43: #{tpu_custom_call.1} parent=1 // pred_check_branch
      %90 = sbr.rel (0) target = $region45
    $region44: #{tpu_custom_call.1} parent=1 // pred_region
      %91 = dma.done [#allocation3], 128
    $region45: #{tpu_custom_call.1} parent=1 // pred_fallthru
      _
    // Predicated region
    $region46: #{tpu_custom_call.1} parent=1 // pred_check
      _
    $region47: #{tpu_custom_call.1} parent=1 // pred_check_branch
      %93 = sbr.rel (0) target = $region49
    $region48: #{tpu_custom_call.1} parent=1 // pred_region
      %94 = dma.done [#allocation6], 128
    $region49: #{tpu_custom_call.1} parent=1 // pred_fallthru
      _
    // Predicated region
    $region50: #{tpu_custom_call.1} parent=1 // pred_check
      _
    $region51: #{tpu_custom_call.1} parent=1 // pred_check_branch
      %96 = sbr.rel (0) target = $region53
    $region52: #{tpu_custom_call.1} parent=1 // pred_region
      %97 = dma.done [#allocation6], 48
    $region53: #{tpu_custom_call.1} parent=1 // pred_fallthru
      _
    // Predicated region
    $region54: #{tpu_custom_call.1} parent=1 // pred_check
      _
    $region55: #{tpu_custom_call.1} parent=1 // pred_check_branch
      %99 = sbr.rel (0) target = $region57
    $region56: #{tpu_custom_call.1} parent=1 // pred_region
      %100 = dma.done [#allocation9], 1536
    $region57: #{tpu_custom_call.1} parent=1 // pred_fallthru
      _
    // Predicated region
    $region58: #{tpu_custom_call.1} parent=1 // pred_check
      _
    $region59: #{tpu_custom_call.1} parent=1 // pred_check_branch
      %102 = sbr.rel (0) target = $region61
    $region60: #{tpu_custom_call.1} parent=1 // pred_region
      %103 = dma.done [#allocation9], 1536
    $region61: #{tpu_custom_call.1} parent=1 // pred_fallthru
      _
    %v104 = vld [vmem:[#allocation2] sm:$0xff]
    %v105 = vld [vmem:[#allocation5] sm:$0xff]
    %vm106 = vcmask 261120
    %v107 = vsel %vm106, %v105, 0.0
    %v108 = vrot.slane %v107, 4
    %v109 = vadd.f32 %v107, %v108
    %v110 = vrot.slane %v109, 2
    %v111 = vadd.f32 %v109, %v110
    %v112 = vrot.slane %v111, 1
    %v113 = vadd.f32 %v111, %v112
    %v114 = vrcp.pop 8.0
    %v115 = vmul.f32 %v113, %v114
    %v116 = vsub.f32 %v105, %v115
    %v117 = vmul.f32 %v116, %v116
    %v118 = vsel %vm106, %v117, 0.0
    %v119 = vrot.slane %v118, 4
    %v120 = vadd.f32 %v118, %v119
    %v121 = vrot.slane %v120, 2
    %v122 = vadd.f32 %v120, %v121
    %v123 = vrot.slane %v122, 1
    %v124 = vadd.f32 %v122, %v123
    %v125 = vmul.f32 %v124, %v114
    %v126 = vadd.f32 %v125, 1e-05
    %v127 = vrsqrt.pop %v126
    %v128 = vmul.f32 %v116, %v127
    %v129 = vld [vmem:[%s2] sm:$0x1]
    %v131 = vlaneseq
    %v132 = vshrl.u32 %v131, 7
    %v133 = vsub.s32 0, %v132
    %v134 = vrot.slane %v129, %v133
    %v136 = vmul.f32 %v128, %v134
    %v137 = vld [vmem:[#allocation7] sm:$0x1]
    %v139 = vlaneseq
    %v140 = vshrl.u32 %v139, 7
    %v141 = vsub.s32 0, %v140
    %v142 = vrot.slane %v137, %v141
    %v144 = vadd.f32 %v136, %v142
    %v145 = vld [vmem:[#allocation8] sm:$0xff]
    %v146 = vld [vmem:[#allocation8 + $0x8] sm:$0xff]
    %v147 = vld [vmem:[#allocation8 + $0x10] sm:$0xff]
    %v148 = vld [vmem:[#allocation8 + $0x18] sm:$0xff]
    %v149 = vld [vmem:[%s5] sm:$0x1]
    %v151 = vlaneseq
    %v152 = vshrl.u32 %v151, 7
    %v153 = vsub.s32 0, %v152
    %v154 = vrot.slane %v149, %v153
    %v157 = vsel %vm106, %v144, 0
    %159 = vmatprep.subr.mxu0 0.0
    %160 = vmatpush1.msra.mxu0 0.0
    %161 = vmatprep.subr.mxu0 0.0
    %162 = vmatpush1.msra.mxu0 0.0
    %163 = vmatprep.subr.mxu0 0.0
    %164 = vmatpush1.msra.mxu0 0.0
    %165 = vmatprep.subr.mxu0 0.0
    %166 = vmatpush1.msra.mxu0 0.0
    %167 = vmatprep.subr.mxu0 0.0
    %168 = vmatpush1.msra.mxu0 0.0
    %169 = vmatprep.subr.mxu0 0.0
    %170 = vmatpush1.msra.mxu0 0.0
    %171 = vmatprep.subr.mxu0 0.0
    %172 = vmatpush1.msra.mxu0 0.0
    %173 = vmatprep.subr.mxu0 0.0
    %174 = vmatpush1.msra.mxu0 0.0
    %175 = vmatprep.subr.mxu0 0.0
    %176 = vmatpush1.msra.mxu0 0.0
    %177 = vmatprep.subr.mxu0 0.0
    %178 = vmatpush1.msra.mxu0 0.0
    %179 = vmatprep.subr.mxu0 0.0
    %180 = vmatpush1.msra.mxu0 0.0
    %181 = vmatprep.subr.mxu0 0.0
    %182 = vmatpush1.msra.mxu0 0.0
    %183 = vmatprep.subr.mxu0 0.0
    %184 = vmatpush1.msra.mxu0 %v148
    %185 = vmatprep.subr.mxu0 0.0
    %186 = vmatpush1.msra.mxu0 %v147
    %187 = vmatprep.subr.mxu0 0.0
    %188 = vmatpush1.msra.mxu0 %v146
    %189 = vmatprep.subr.mxu0 0.0
    %190 = vmatpush1.msra.mxu0 %v145
    %191 = vmatprep.subr.mxu0 0.0
    %192 = vmatpush2.msra.mxu0 0.0
    %193 = vmatprep.subr.mxu0 0.0
    %194 = vmatpush2.msra.mxu0 0.0
    %195 = vmatprep.subr.mxu0 0.0
    %196 = vmatpush2.msra.mxu0 0.0
    %197 = vmatprep.subr.mxu0 0.0
    %198 = vmatpush2.msra.mxu0 0.0
    %199 = vmatprep.subr.mxu0 0.0
    %200 = vmatpush2.msra.mxu0 0.0
    %201 = vmatprep.subr.mxu0 0.0
    %202 = vmatpush2.msra.mxu0 0.0
    %203 = vmatprep.subr.mxu0 0.0
    %204 = vmatpush2.msra.mxu0 0.0
    %205 = vmatprep.subr.mxu0 0.0
    %206 = vmatpush2.msra.mxu0 0.0
    %207 = vmatprep.subr.mxu0 0.0
    %208 = vmatpush2.msra.mxu0 0.0
    %209 = vmatprep.subr.mxu0 0.0
    %210 = vmatpush2.msra.mxu0 0.0
    %211 = vmatprep.subr.mxu0 0.0
    %212 = vmatpush2.msra.mxu0 0.0
    %213 = vmatprep.subr.mxu0 0.0
    %214 = vmatpush2.msra.mxu0 0.0
    %215 = vmatprep.subr.mxu0 0.0
    %216 = vmatpush2.msra.mxu0 0.0
    %217 = vmatprep.subr.mxu0 0.0
    %218 = vmatpush2.msra.mxu0 0.0
    %219 = vmatprep.subr.mxu0 0.0
    %220 = vmatpush2.msra.mxu0 0.0
    %221 = vmatprep.subr.mxu0 0.0
    %222 = vmatpush2.msra.mxu0 0.0
    %223 = vmatprep.mubr.f32.mxu0 0.0
    %224 = vmatmul.mubr.f32.gmra.mxu0 %v157
    %v225 = vpop.f32.mrf.mxu0
    %v226 = vadd.f32 %v154, %v225
    %v227 = vpop.f32.mrf.mxu0
    %228 = vdwg.mxu0
    %v229 = vmax.f32 %v226, 0.0
    %v230 = vsel %vm106, %v229, 0.0
    %v231 = vrot.slane %v230, 4
    %v232 = vadd.f32 %v230, %v231
    %v233 = vrot.slane %v232, 2
    %v234 = vadd.f32 %v232, %v233
    %v235 = vrot.slane %v234, 1
    %v236 = vadd.f32 %v234, %v235
    %v237 = vmul.f32 %v236, %v114
    %v238 = vsub.f32 %v229, %v237
    %v239 = vmul.f32 %v238, %v238
    %v240 = vsel %vm106, %v239, 0.0
    %v241 = vrot.slane %v240, 4
    %v242 = vadd.f32 %v240, %v241
    %v243 = vrot.slane %v242, 2
    %v244 = vadd.f32 %v242, %v243
    %v245 = vrot.slane %v244, 1
    %v246 = vadd.f32 %v244, %v245
    %v247 = vmul.f32 %v246, %v114
    %v248 = vadd.f32 %v247, 1e-05
    %v249 = vrsqrt.pop %v248
    %v250 = vmul.f32 %v238, %v249
    %v251 = vld [vmem:[%s6] sm:$0x1]
    %v253 = vlaneseq
    %v254 = vshrl.u32 %v253, 7
    %v255 = vsub.s32 0, %v254
    %v256 = vrot.slane %v251, %v255
    %v258 = vmul.f32 %v250, %v256
    %v259 = vld [vmem:[%s7] sm:$0x1]
    %v261 = vlaneseq
    %v262 = vshrl.u32 %v261, 7
    %v263 = vsub.s32 0, %v262
    %v264 = vrot.slane %v259, %v263
    %v266 = vadd.f32 %v258, %v264
    %v267 = vld [vmem:[#allocation10] sm:$0xff]
    %v268 = vld [vmem:[#allocation10 + $0x8] sm:$0xff]
    %v269 = vld [vmem:[#allocation10 + $0x10] sm:$0xff]
    %v270 = vld [vmem:[#allocation10 + $0x18] sm:$0xff]
    %v271 = vld [vmem:[%s9] sm:$0x1]
    %v273 = vlaneseq
    %v274 = vshrl.u32 %v273, 7
    %v275 = vsub.s32 0, %v274
    %v276 = vrot.slane %v271, %v275
    %v279 = vsel %vm106, %v266, 0
    %281 = vmatprep.subr.mxu0 0.0
    %282 = vmatpush1.msra.mxu0 0.0
    %283 = vmatprep.subr.mxu0 0.0
    %284 = vmatpush1.msra.mxu0 0.0
    %285 = vmatprep.subr.mxu0 0.0
    %286 = vmatpush1.msra.mxu0 0.0
    %287 = vmatprep.subr.mxu0 0.0
    %288 = vmatpush1.msra.mxu0 0.0
    %289 = vmatprep.subr.mxu0 0.0
    %290 = vmatpush1.msra.mxu0 0.0
    %291 = vmatprep.subr.mxu0 0.0
    %292 = vmatpush1.msra.mxu0 0.0
    %293 = vmatprep.subr.mxu0 0.0
    %294 = vmatpush1.msra.mxu0 0.0
    %295 = vmatprep.subr.mxu0 0.0
    %296 = vmatpush1.msra.mxu0 0.0
    %297 = vmatprep.subr.mxu0 0.0
    %298 = vmatpush1.msra.mxu0 0.0
    %299 = vmatprep.subr.mxu0 0.0
    %300 = vmatpush1.msra.mxu0 0.0
    %301 = vmatprep.subr.mxu0 0.0
    %302 = vmatpush1.msra.mxu0 0.0
    %303 = vmatprep.subr.mxu0 0.0
    %304 = vmatpush1.msra.mxu0 0.0
    %305 = vmatprep.subr.mxu0 0.0
    %306 = vmatpush1.msra.mxu0 %v270
    %307 = vmatprep.subr.mxu0 0.0
    %308 = vmatpush1.msra.mxu0 %v269
    %309 = vmatprep.subr.mxu0 0.0
    %310 = vmatpush1.msra.mxu0 %v268
    %311 = vmatprep.subr.mxu0 0.0
    %312 = vmatpush1.msra.mxu0 %v267
    %313 = vmatprep.subr.mxu0 0.0
    %314 = vmatpush2.msra.mxu0 0.0
    %315 = vmatprep.subr.mxu0 0.0
    %316 = vmatpush2.msra.mxu0 0.0
    %317 = vmatprep.subr.mxu0 0.0
    %318 = vmatpush2.msra.mxu0 0.0
    %319 = vmatprep.subr.mxu0 0.0
    %320 = vmatpush2.msra.mxu0 0.0
    %321 = vmatprep.subr.mxu0 0.0
    %322 = vmatpush2.msra.mxu0 0.0
    %323 = vmatprep.subr.mxu0 0.0
    %324 = vmatpush2.msra.mxu0 0.0
    %325 = vmatprep.subr.mxu0 0.0
    %326 = vmatpush2.msra.mxu0 0.0
    %327 = vmatprep.subr.mxu0 0.0
    %328 = vmatpush2.msra.mxu0 0.0
    %329 = vmatprep.subr.mxu0 0.0
    %330 = vmatpush2.msra.mxu0 0.0
    %331 = vmatprep.subr.mxu0 0.0
    %332 = vmatpush2.msra.mxu0 0.0
    %333 = vmatprep.subr.mxu0 0.0
    %334 = vmatpush2.msra.mxu0 0.0
    %335 = vmatprep.subr.mxu0 0.0
    %336 = vmatpush2.msra.mxu0 0.0
    %337 = vmatprep.subr.mxu0 0.0
    %338 = vmatpush2.msra.mxu0 0.0
    %339 = vmatprep.subr.mxu0 0.0
    %340 = vmatpush2.msra.mxu0 0.0
    %341 = vmatprep.subr.mxu0 0.0
    %342 = vmatpush2.msra.mxu0 0.0
    %343 = vmatprep.subr.mxu0 0.0
    %344 = vmatpush2.msra.mxu0 0.0
    %345 = vmatprep.mubr.f32.mxu0 0.0
    %346 = vmatmul.mubr.f32.gmra.mxu0 %v279
    %v347 = vpop.f32.mrf.mxu0
    %v348 = vadd.f32 %v276, %v347
    %v349 = vpop.f32.mrf.mxu0
    %350 = vdwg.mxu0
    %351 = vmax.xlane.f32.xlu0 %v348
    %v352 = vpop.xlane.xlu0 %351
    %v353 = vsub.f32 %v348, %v352
    %v354 = vmul.f32 %v353, 1.442695
    %v355 = vpow.pop %v354
    %356 = vadd.xlane.f32.xlu0 %v355
    %v357 = vpop.xlane.xlu0 %356
    %v358 = vlog2.pop %v357
    %v359 = vmul.f32 %v358, 0.6931472
    %v360 = vsub.f32 %v353, %v359
    %361 = vst [vmem:[#allocation11] sm:$0xff] %v360
    %v362 = vsel %vm106, %v104, 0.0
    %v363 = vrot.slane %v362, 4
    %v364 = vadd.f32 %v362, %v363
    %v365 = vrot.slane %v364, 2
    %v366 = vadd.f32 %v364, %v365
    %v367 = vrot.slane %v366, 1
    %v368 = vadd.f32 %v366, %v367
    %v369 = vmul.f32 %v368, %v114
    %v370 = vsub.f32 %v104, %v369
    %v371 = vmul.f32 %v370, %v370
    %v372 = vsel %vm106, %v371, 0.0
    %v373 = vrot.slane %v372, 4
    %v374 = vadd.f32 %v372, %v373
    %v375 = vrot.slane %v374, 2
    %v376 = vadd.f32 %v374, %v375
    %v377 = vrot.slane %v376, 1
    %v378 = vadd.f32 %v376, %v377
    %v379 = vmul.f32 %v378, %v114
    %v380 = vadd.f32 %v379, 1e-05
    %v381 = vrsqrt.pop %v380
    %v382 = vmul.f32 %v370, %v381
    %s383 = scalar_lea.vmem %s2, 1
    %v384 = vld [vmem:[%s383] sm:$0x1]
    %v386 = vlaneseq
    %v387 = vshrl.u32 %v386, 7
    %v388 = vsub.s32 0, %v387
    %v389 = vrot.slane %v384, %v388
    %v391 = vmul.f32 %v382, %v389
    %s392 = scalar_lea.vmem [#allocation7], 1
    %v393 = vld [vmem:[%s392] sm:$0x1]
    %v395 = vlaneseq
    %v396 = vshrl.u32 %v395, 7
    %v397 = vsub.s32 0, %v396
    %v398 = vrot.slane %v393, %v397
    %v400 = vadd.f32 %v391, %v398
    %s401 = scalar_lea.vmem [#allocation8], 32
    %v402 = vld [vmem:[%s401] sm:$0xff]
    %v403 = vld [vmem:[%s401 + $0x8] sm:$0xff]
    %v404 = vld [vmem:[%s401 + $0x10] sm:$0xff]
    %v405 = vld [vmem:[%s401 + $0x18] sm:$0xff]
    %s406 = scalar_lea.vmem %s5, 1
    %v407 = vld [vmem:[%s406] sm:$0x1]
    %v409 = vlaneseq
    %v410 = vshrl.u32 %v409, 7
    %v411 = vsub.s32 0, %v410
    %v412 = vrot.slane %v407, %v411
    %v415 = vsel %vm106, %v400, 0
    %417 = vmatprep.subr.mxu0 0.0
    %418 = vmatpush1.msra.mxu0 0.0
    %419 = vmatprep.subr.mxu0 0.0
    %420 = vmatpush1.msra.mxu0 0.0
    %421 = vmatprep.subr.mxu0 0.0
    %422 = vmatpush1.msra.mxu0 0.0
    %423 = vmatprep.subr.mxu0 0.0
    %424 = vmatpush1.msra.mxu0 0.0
    %425 = vmatprep.subr.mxu0 0.0
    %426 = vmatpush1.msra.mxu0 0.0
    %427 = vmatprep.subr.mxu0 0.0
    %428 = vmatpush1.msra.mxu0 0.0
    %429 = vmatprep.subr.mxu0 0.0
    %430 = vmatpush1.msra.mxu0 0.0
    %431 = vmatprep.subr.mxu0 0.0
    %432 = vmatpush1.msra.mxu0 0.0
    %433 = vmatprep.subr.mxu0 0.0
    %434 = vmatpush1.msra.mxu0 0.0
    %435 = vmatprep.subr.mxu0 0.0
    %436 = vmatpush1.msra.mxu0 0.0
    %437 = vmatprep.subr.mxu0 0.0
    %438 = vmatpush1.msra.mxu0 0.0
    %439 = vmatprep.subr.mxu0 0.0
    %440 = vmatpush1.msra.mxu0 0.0
    %441 = vmatprep.subr.mxu0 0.0
    %442 = vmatpush1.msra.mxu0 %v405
    %443 = vmatprep.subr.mxu0 0.0
    %444 = vmatpush1.msra.mxu0 %v404
    %445 = vmatprep.subr.mxu0 0.0
    %446 = vmatpush1.msra.mxu0 %v403
    %447 = vmatprep.subr.mxu0 0.0
    %448 = vmatpush1.msra.mxu0 %v402
    %449 = vmatprep.subr.mxu0 0.0
    %450 = vmatpush2.msra.mxu0 0.0
    %451 = vmatprep.subr.mxu0 0.0
    %452 = vmatpush2.msra.mxu0 0.0
    %453 = vmatprep.subr.mxu0 0.0
    %454 = vmatpush2.msra.mxu0 0.0
    %455 = vmatprep.subr.mxu0 0.0
    %456 = vmatpush2.msra.mxu0 0.0
    %457 = vmatprep.subr.mxu0 0.0
    %458 = vmatpush2.msra.mxu0 0.0
    %459 = vmatprep.subr.mxu0 0.0
    %460 = vmatpush2.msra.mxu0 0.0
    %461 = vmatprep.subr.mxu0 0.0
    %462 = vmatpush2.msra.mxu0 0.0
    %463 = vmatprep.subr.mxu0 0.0
    %464 = vmatpush2.msra.mxu0 0.0
    %465 = vmatprep.subr.mxu0 0.0
    %466 = vmatpush2.msra.mxu0 0.0
    %467 = vmatprep.subr.mxu0 0.0
    %468 = vmatpush2.msra.mxu0 0.0
    %469 = vmatprep.subr.mxu0 0.0
    %470 = vmatpush2.msra.mxu0 0.0
    %471 = vmatprep.subr.mxu0 0.0
    %472 = vmatpush2.msra.mxu0 0.0
    %473 = vmatprep.subr.mxu0 0.0
    %474 = vmatpush2.msra.mxu0 0.0
    %475 = vmatprep.subr.mxu0 0.0
    %476 = vmatpush2.msra.mxu0 0.0
    %477 = vmatprep.subr.mxu0 0.0
    %478 = vmatpush2.msra.mxu0 0.0
    %479 = vmatprep.subr.mxu0 0.0
    %480 = vmatpush2.msra.mxu0 0.0
    %481 = vmatprep.mubr.f32.mxu0 0.0
    %482 = vmatmul.mubr.f32.gmra.mxu0 %v415
    %v483 = vpop.f32.mrf.mxu0
    %v484 = vadd.f32 %v412, %v483
    %v485 = vpop.f32.mrf.mxu0
    %486 = vdwg.mxu0
    %v487 = vmax.f32 %v484, 0.0
    %v488 = vsel %vm106, %v487, 0.0
    %v489 = vrot.slane %v488, 4
    %v490 = vadd.f32 %v488, %v489
    %v491 = vrot.slane %v490, 2
    %v492 = vadd.f32 %v490, %v491
    %v493 = vrot.slane %v492, 1
    %v494 = vadd.f32 %v492, %v493
    %v495 = vmul.f32 %v494, %v114
    %v496 = vsub.f32 %v487, %v495
    %v497 = vmul.f32 %v496, %v496
    %v498 = vsel %vm106, %v497, 0.0
    %v499 = vrot.slane %v498, 4
    %v500 = vadd.f32 %v498, %v499
    %v501 = vrot.slane %v500, 2
    %v502 = vadd.f32 %v500, %v501
    %v503 = vrot.slane %v502, 1
    %v504 = vadd.f32 %v502, %v503
    %v505 = vmul.f32 %v504, %v114
    %v506 = vadd.f32 %v505, 1e-05
    %v507 = vrsqrt.pop %v506
    %v508 = vmul.f32 %v496, %v507
    %s509 = scalar_lea.vmem %s6, 1
    %v510 = vld [vmem:[%s509] sm:$0x1]
    %v512 = vlaneseq
    %v513 = vshrl.u32 %v512, 7
    %v514 = vsub.s32 0, %v513
    %v515 = vrot.slane %v510, %v514
    %v517 = vmul.f32 %v508, %v515
    %s518 = scalar_lea.vmem %s7, 1
    %v519 = vld [vmem:[%s518] sm:$0x1]
    %v521 = vlaneseq
    %v522 = vshrl.u32 %v521, 7
    %v523 = vsub.s32 0, %v522
    %v524 = vrot.slane %v519, %v523
    %v526 = vadd.f32 %v517, %v524
    %s527 = scalar_lea.vmem [#allocation10], 32
    %v528 = vld [vmem:[%s527] sm:$0xff]
    %v529 = vld [vmem:[%s527 + $0x8] sm:$0xff]
    %v530 = vld [vmem:[%s527 + $0x10] sm:$0xff]
    %v531 = vld [vmem:[%s527 + $0x18] sm:$0xff]
    %s532 = scalar_lea.vmem %s9, 1
    %v533 = vld [vmem:[%s532] sm:$0x1]
    %v535 = vlaneseq
    %v536 = vshrl.u32 %v535, 7
    %v537 = vsub.s32 0, %v536
    %v538 = vrot.slane %v533, %v537
    %v541 = vsel %vm106, %v526, 0
    %543 = vmatprep.subr.mxu0 0.0
    %544 = vmatpush1.msra.mxu0 0.0
    %545 = vmatprep.subr.mxu0 0.0
    %546 = vmatpush1.msra.mxu0 0.0
    %547 = vmatprep.subr.mxu0 0.0
    %548 = vmatpush1.msra.mxu0 0.0
    %549 = vmatprep.subr.mxu0 0.0
    %550 = vmatpush1.msra.mxu0 0.0
    %551 = vmatprep.subr.mxu0 0.0
    %552 = vmatpush1.msra.mxu0 0.0
    %553 = vmatprep.subr.mxu0 0.0
    %554 = vmatpush1.msra.mxu0 0.0
    %555 = vmatprep.subr.mxu0 0.0
    %556 = vmatpush1.msra.mxu0 0.0
    %557 = vmatprep.subr.mxu0 0.0
    %558 = vmatpush1.msra.mxu0 0.0
    %559 = vmatprep.subr.mxu0 0.0
    %560 = vmatpush1.msra.mxu0 0.0
    %561 = vmatprep.subr.mxu0 0.0
    %562 = vmatpush1.msra.mxu0 0.0
    %563 = vmatprep.subr.mxu0 0.0
    %564 = vmatpush1.msra.mxu0 0.0
    %565 = vmatprep.subr.mxu0 0.0
    %566 = vmatpush1.msra.mxu0 0.0
    %567 = vmatprep.subr.mxu0 0.0
    %568 = vmatpush1.msra.mxu0 %v531
    %569 = vmatprep.subr.mxu0 0.0
    %570 = vmatpush1.msra.mxu0 %v530
    %571 = vmatprep.subr.mxu0 0.0
    %572 = vmatpush1.msra.mxu0 %v529
    %573 = vmatprep.subr.mxu0 0.0
    %574 = vmatpush1.msra.mxu0 %v528
    %575 = vmatprep.subr.mxu0 0.0
    %576 = vmatpush2.msra.mxu0 0.0
    %577 = vmatprep.subr.mxu0 0.0
    %578 = vmatpush2.msra.mxu0 0.0
    %579 = vmatprep.subr.mxu0 0.0
    %580 = vmatpush2.msra.mxu0 0.0
    %581 = vmatprep.subr.mxu0 0.0
    %582 = vmatpush2.msra.mxu0 0.0
    %583 = vmatprep.subr.mxu0 0.0
    %584 = vmatpush2.msra.mxu0 0.0
    %585 = vmatprep.subr.mxu0 0.0
    %586 = vmatpush2.msra.mxu0 0.0
    %587 = vmatprep.subr.mxu0 0.0
    %588 = vmatpush2.msra.mxu0 0.0
    %589 = vmatprep.subr.mxu0 0.0
    %590 = vmatpush2.msra.mxu0 0.0
    %591 = vmatprep.subr.mxu0 0.0
    %592 = vmatpush2.msra.mxu0 0.0
    %593 = vmatprep.subr.mxu0 0.0
    %594 = vmatpush2.msra.mxu0 0.0
    %595 = vmatprep.subr.mxu0 0.0
    %596 = vmatpush2.msra.mxu0 0.0
    %597 = vmatprep.subr.mxu0 0.0
    %598 = vmatpush2.msra.mxu0 0.0
    %599 = vmatprep.subr.mxu0 0.0
    %600 = vmatpush2.msra.mxu0 0.0
    %601 = vmatprep.subr.mxu0 0.0
    %602 = vmatpush2.msra.mxu0 0.0
    %603 = vmatprep.subr.mxu0 0.0
    %604 = vmatpush2.msra.mxu0 0.0
    %605 = vmatprep.subr.mxu0 0.0
    %606 = vmatpush2.msra.mxu0 0.0
    %607 = vmatprep.mubr.f32.mxu0 0.0
    %608 = vmatmul.mubr.f32.gmra.mxu0 %v541
    %v609 = vpop.f32.mrf.mxu0
    %v610 = vadd.f32 %v538, %v609
    %v611 = vpop.f32.mrf.mxu0
    %612 = vdwg.mxu0
    %613 = vmax.xlane.f32.xlu0 %v610
    %v614 = vpop.xlane.xlu0 %613
    %v615 = vsub.f32 %v610, %v614
    %v616 = vmul.f32 %v615, 1.442695
    %v617 = vpow.pop %v616
    %618 = vadd.xlane.f32.xlu0 %v617
    %v619 = vpop.xlane.xlu0 %618
    %v620 = vlog2.pop %v619
    %v621 = vmul.f32 %v620, 0.6931472
    %v622 = vsub.f32 %v615, %v621
    %623 = vst [vmem:[#allocation12] sm:$0xff] %v622
    %v624 = vlaneseq
    %v625 = vshrl.u32 %v624, 7
    %v626 = vsub.s32 0, %v625
    %v627 = vrot.slane %v104, %v626
    %v628 = vadd.f32 %v627, %v105
    %v629 = vlaneseq
    %v630 = vshrl.u32 %v629, 7
    %v631 = vsub.s32 1, %v630
    %v632 = vrot.slane %v104, %v631
    %v633 = vadd.f32 %v632, %v105
    %v634 = vlaneseq
    %v635 = vshrl.u32 %v634, 7
    %v636 = vsub.s32 2, %v635
    %v637 = vrot.slane %v104, %v636
    %v638 = vadd.f32 %v637, %v105
    %v639 = vlaneseq
    %v640 = vshrl.u32 %v639, 7
    %v641 = vsub.s32 3, %v640
    %v642 = vrot.slane %v104, %v641
    %v643 = vadd.f32 %v642, %v105
    %v644 = vlaneseq
    %v645 = vshrl.u32 %v644, 7
    %v646 = vsub.s32 4, %v645
    %v647 = vrot.slane %v104, %v646
    %v648 = vadd.f32 %v647, %v105
    %v649 = vlaneseq
    %v650 = vshrl.u32 %v649, 7
    %v651 = vsub.s32 5, %v650
    %v652 = vrot.slane %v104, %v651
    %v653 = vadd.f32 %v652, %v105
    %v654 = vlaneseq
    %v655 = vshrl.u32 %v654, 7
    %v656 = vsub.s32 6, %v655
    %v657 = vrot.slane %v104, %v656
    %v658 = vadd.f32 %v657, %v105
    %v659 = vlaneseq
    %v660 = vshrl.u32 %v659, 7
    %v661 = vsub.s32 7, %v660
    %v662 = vrot.slane %v104, %v661
    %v663 = vadd.f32 %v662, %v105
    %v664 = vsel %vm106, %v628, 0.0
    %v665 = vsel %vm106, %v633, 0.0
    %v666 = vadd.f32 %v664, %v665
    %v667 = vsel %vm106, %v638, 0.0
    %v668 = vadd.f32 %v666, %v667
    %v669 = vsel %vm106, %v643, 0.0
    %v670 = vadd.f32 %v668, %v669
    %v671 = vsel %vm106, %v648, 0.0
    %v672 = vadd.f32 %v670, %v671
    %v673 = vsel %vm106, %v653, 0.0
    %v674 = vadd.f32 %v672, %v673
    %v675 = vsel %vm106, %v658, 0.0
    %v676 = vadd.f32 %v674, %v675
    %v677 = vsel %vm106, %v663, 0.0
    %v678 = vadd.f32 %v676, %v677
    %v679 = vrot.slane %v678, 4
    %v680 = vadd.f32 %v678, %v679
    %v681 = vrot.slane %v680, 2
    %v682 = vadd.f32 %v680, %v681
    %v683 = vrot.slane %v682, 1
    %v684 = vadd.f32 %v682, %v683
    %v685 = vrcp.pop 64.0
    %v686 = vmul.f32 %v684, %v685
    %v687 = vsub.f32 %v628, %v686
    %v688 = vsub.f32 %v633, %v686
    %v689 = vsub.f32 %v638, %v686
    %v690 = vsub.f32 %v643, %v686
    %v691 = vsub.f32 %v648, %v686
    %v692 = vsub.f32 %v653, %v686
    %v693 = vsub.f32 %v658, %v686
    %v694 = vsub.f32 %v663, %v686
    %v695 = vmul.f32 %v687, %v687
    %v696 = vmul.f32 %v688, %v688
    %v697 = vmul.f32 %v689, %v689
    %v698 = vmul.f32 %v690, %v690
    %v699 = vmul.f32 %v691, %v691
    %v700 = vmul.f32 %v692, %v692
    %v701 = vmul.f32 %v693, %v693
    %v702 = vmul.f32 %v694, %v694
    %v703 = vsel %vm106, %v695, 0.0
    %v704 = vsel %vm106, %v696, 0.0
    %v705 = vadd.f32 %v703, %v704
    %v706 = vsel %vm106, %v697, 0.0
    %v707 = vadd.f32 %v705, %v706
    %v708 = vsel %vm106, %v698, 0.0
    %v709 = vadd.f32 %v707, %v708
    %v710 = vsel %vm106, %v699, 0.0
    %v711 = vadd.f32 %v709, %v710
    %v712 = vsel %vm106, %v700, 0.0
    %v713 = vadd.f32 %v711, %v712
    %v714 = vsel %vm106, %v701, 0.0
    %v715 = vadd.f32 %v713, %v714
    %v716 = vsel %vm106, %v702, 0.0
    %v717 = vadd.f32 %v715, %v716
    %v718 = vrot.slane %v717, 4
    %v719 = vadd.f32 %v717, %v718
    %v720 = vrot.slane %v719, 2
    %v721 = vadd.f32 %v719, %v720
    %v722 = vrot.slane %v721, 1
    %v723 = vadd.f32 %v721, %v722
    %v724 = vmul.f32 %v723, %v685
    %v725 = vadd.f32 %v724, 1e-05
    %v726 = vrsqrt.pop %v725
    %v727 = vmul.f32 %v687, %v726
    %v728 = vmul.f32 %v688, %v726
    %v729 = vmul.f32 %v689, %v726
    %v730 = vmul.f32 %v690, %v726
    %v731 = vmul.f32 %v691, %v726
    %v732 = vmul.f32 %v692, %v726
    %v733 = vmul.f32 %v693, %v726
    %v734 = vmul.f32 %v694, %v726
    %s735 = scalar_lea.vmem %s2, 2
    %v736 = vld [vmem:[%s735] sm:$0x1]
    %v738 = vlaneseq
    %v739 = vshrl.u32 %v738, 7
    %v740 = vsub.s32 0, %v739
    %v741 = vrot.slane %v736, %v740
    %v743 = vmul.f32 %v727, %v741
    %v744 = vmul.f32 %v728, %v741
    %v745 = vmul.f32 %v729, %v741
    %v746 = vmul.f32 %v730, %v741
    %v747 = vmul.f32 %v731, %v741
    %v748 = vmul.f32 %v732, %v741
    %v749 = vmul.f32 %v733, %v741
    %v750 = vmul.f32 %v734, %v741
    %s751 = scalar_lea.vmem [#allocation7], 2
    %v752 = vld [vmem:[%s751] sm:$0x1]
    %v754 = vlaneseq
    %v755 = vshrl.u32 %v754, 7
    %v756 = vsub.s32 0, %v755
    %v757 = vrot.slane %v752, %v756
    %v759 = vadd.f32 %v743, %v757
    %v760 = vadd.f32 %v744, %v757
    %v761 = vadd.f32 %v745, %v757
    %v762 = vadd.f32 %v746, %v757
    %v763 = vadd.f32 %v747, %v757
    %v764 = vadd.f32 %v748, %v757
    %v765 = vadd.f32 %v749, %v757
    %v766 = vadd.f32 %v750, %v757
    %s767 = scalar_lea.vmem [#allocation8], 64
    %v768 = vld [vmem:[%s767] sm:$0xff]
    %v769 = vld [vmem:[%s767 + $0x8] sm:$0xff]
    %v770 = vld [vmem:[%s767 + $0x10] sm:$0xff]
    %v771 = vld [vmem:[%s767 + $0x18] sm:$0xff]
    %s772 = scalar_lea.vmem %s5, 2
    %v773 = vld [vmem:[%s772] sm:$0x1]
    %v775 = vlaneseq
    %v776 = vshrl.u32 %v775, 7
    %v777 = vsub.s32 0, %v776
    %v778 = vrot.slane %v773, %v777
    %v781 = vsel %vm106, %v759, 0
    %v784 = vsel %vm106, %v760, 0
    %v787 = vsel %vm106, %v761, 0
    %v790 = vsel %vm106, %v762, 0
    %v793 = vsel %vm106, %v763, 0
    %v796 = vsel %vm106, %v764, 0
    %v799 = vsel %vm106, %v765, 0
    %v802 = vsel %vm106, %v766, 0
    %804 = vmatprep.subr.mxu0 0.0
    %805 = vmatpush1.msra.mxu0 0.0
    %806 = vmatprep.subr.mxu0 0.0
    %807 = vmatpush1.msra.mxu0 0.0
    %808 = vmatprep.subr.mxu0 0.0
    %809 = vmatpush1.msra.mxu0 0.0
    %810 = vmatprep.subr.mxu0 0.0
    %811 = vmatpush1.msra.mxu0 0.0
    %812 = vmatprep.subr.mxu0 0.0
    %813 = vmatpush1.msra.mxu0 0.0
    %814 = vmatprep.subr.mxu0 0.0
    %815 = vmatpush1.msra.mxu0 0.0
    %816 = vmatprep.subr.mxu0 0.0
    %817 = vmatpush1.msra.mxu0 0.0
    %818 = vmatprep.subr.mxu0 0.0
    %819 = vmatpush1.msra.mxu0 0.0
    %820 = vmatprep.subr.mxu0 0.0
    %821 = vmatpush1.msra.mxu0 0.0
    %822 = vmatprep.subr.mxu0 0.0
    %823 = vmatpush1.msra.mxu0 0.0
    %824 = vmatprep.subr.mxu0 0.0
    %825 = vmatpush1.msra.mxu0 0.0
    %826 = vmatprep.subr.mxu0 0.0
    %827 = vmatpush1.msra.mxu0 0.0
    %828 = vmatprep.subr.mxu0 0.0
    %829 = vmatpush1.msra.mxu0 %v771
    %830 = vmatprep.subr.mxu0 0.0
    %831 = vmatpush1.msra.mxu0 %v770
    %832 = vmatprep.subr.mxu0 0.0
    %833 = vmatpush1.msra.mxu0 %v769
    %834 = vmatprep.subr.mxu0 0.0
    %835 = vmatpush1.msra.mxu0 %v768
    %836 = vmatprep.subr.mxu0 0.0
    %837 = vmatpush2.msra.mxu0 0.0
    %838 = vmatprep.subr.mxu0 0.0
    %839 = vmatpush2.msra.mxu0 0.0
    %840 = vmatprep.subr.mxu0 0.0
    %841 = vmatpush2.msra.mxu0 0.0
    %842 = vmatprep.subr.mxu0 0.0
    %843 = vmatpush2.msra.mxu0 0.0
    %844 = vmatprep.subr.mxu0 0.0
    %845 = vmatpush2.msra.mxu0 0.0
    %846 = vmatprep.subr.mxu0 0.0
    %847 = vmatpush2.msra.mxu0 0.0
    %848 = vmatprep.subr.mxu0 0.0
    %849 = vmatpush2.msra.mxu0 0.0
    %850 = vmatprep.subr.mxu0 0.0
    %851 = vmatpush2.msra.mxu0 0.0
    %852 = vmatprep.subr.mxu0 0.0
    %853 = vmatpush2.msra.mxu0 0.0
    %854 = vmatprep.subr.mxu0 0.0
    %855 = vmatpush2.msra.mxu0 0.0
    %856 = vmatprep.subr.mxu0 0.0
    %857 = vmatpush2.msra.mxu0 0.0
    %858 = vmatprep.subr.mxu0 0.0
    %859 = vmatpush2.msra.mxu0 0.0
    %860 = vmatprep.subr.mxu0 0.0
    %861 = vmatpush2.msra.mxu0 0.0
    %862 = vmatprep.subr.mxu0 0.0
    %863 = vmatpush2.msra.mxu0 0.0
    %864 = vmatprep.subr.mxu0 0.0
    %865 = vmatpush2.msra.mxu0 0.0
    %866 = vmatprep.subr.mxu0 0.0
    %867 = vmatpush2.msra.mxu0 0.0
    %868 = vmatprep.mubr.f32.mxu0 0.0
    %869 = vmatmul.mubr.f32.gmra.mxu0 %v781
    %v870 = vpop.f32.mrf.mxu0
    %v871 = vadd.f32 %v778, %v870
    %v872 = vpop.f32.mrf.mxu0
    %873 = vmatprep.mubr.f32.mxu0 0.0
    %874 = vmatmul.mubr.f32.gmra.mxu0 %v784
    %v875 = vpop.f32.mrf.mxu0
    %v876 = vadd.f32 %v778, %v875
    %v877 = vpop.f32.mrf.mxu0
    %878 = vmatprep.mubr.f32.mxu0 0.0
    %879 = vmatmul.mubr.f32.gmra.mxu0 %v787
    %v880 = vpop.f32.mrf.mxu0
    %v881 = vadd.f32 %v778, %v880
    %v882 = vpop.f32.mrf.mxu0
    %883 = vmatprep.mubr.f32.mxu0 0.0
    %884 = vmatmul.mubr.f32.gmra.mxu0 %v790
    %v885 = vpop.f32.mrf.mxu0
    %v886 = vadd.f32 %v778, %v885
    %v887 = vpop.f32.mrf.mxu0
    %888 = vmatprep.mubr.f32.mxu0 0.0
    %889 = vmatmul.mubr.f32.gmra.mxu0 %v793
    %v890 = vpop.f32.mrf.mxu0
    %v891 = vadd.f32 %v778, %v890
    %v892 = vpop.f32.mrf.mxu0
    %893 = vmatprep.mubr.f32.mxu0 0.0
    %894 = vmatmul.mubr.f32.gmra.mxu0 %v796
    %v895 = vpop.f32.mrf.mxu0
    %v896 = vadd.f32 %v778, %v895
    %v897 = vpop.f32.mrf.mxu0
    %898 = vmatprep.mubr.f32.mxu0 0.0
    %899 = vmatmul.mubr.f32.gmra.mxu0 %v799
    %v900 = vpop.f32.mrf.mxu0
    %v901 = vadd.f32 %v778, %v900
    %v902 = vpop.f32.mrf.mxu0
    %903 = vmatprep.mubr.f32.mxu0 0.0
    %904 = vmatmul.mubr.f32.gmra.mxu0 %v802
    %v905 = vpop.f32.mrf.mxu0
    %v906 = vadd.f32 %v778, %v905
    %v907 = vpop.f32.mrf.mxu0
    %908 = vdwg.mxu0
    %v909 = vmax.f32 %v871, 0.0
    %v910 = vmax.f32 %v876, 0.0
    %v911 = vmax.f32 %v881, 0.0
    %v912 = vmax.f32 %v886, 0.0
    %v913 = vmax.f32 %v891, 0.0
    %v914 = vmax.f32 %v896, 0.0
    %v915 = vmax.f32 %v901, 0.0
    %v916 = vmax.f32 %v906, 0.0
    %v917 = vsel %vm106, %v909, 0.0
    %v918 = vsel %vm106, %v910, 0.0
    %v919 = vadd.f32 %v917, %v918
    %v920 = vsel %vm106, %v911, 0.0
    %v921 = vadd.f32 %v919, %v920
    %v922 = vsel %vm106, %v912, 0.0
    %v923 = vadd.f32 %v921, %v922
    %v924 = vsel %vm106, %v913, 0.0
    %v925 = vadd.f32 %v923, %v924
    %v926 = vsel %vm106, %v914, 0.0
    %v927 = vadd.f32 %v925, %v926
    %v928 = vsel %vm106, %v915, 0.0
    %v929 = vadd.f32 %v927, %v928
    %v930 = vsel %vm106, %v916, 0.0
    %v931 = vadd.f32 %v929, %v930
    %v932 = vrot.slane %v931, 4
    %v933 = vadd.f32 %v931, %v932
    %v934 = vrot.slane %v933, 2
    %v935 = vadd.f32 %v933, %v934
    %v936 = vrot.slane %v935, 1
    %v937 = vadd.f32 %v935, %v936
    %v938 = vmul.f32 %v937, %v685
    %v939 = vsub.f32 %v909, %v938
    %v940 = vsub.f32 %v910, %v938
    %v941 = vsub.f32 %v911, %v938
    %v942 = vsub.f32 %v912, %v938
    %v943 = vsub.f32 %v913, %v938
    %v944 = vsub.f32 %v914, %v938
    %v945 = vsub.f32 %v915, %v938
    %v946 = vsub.f32 %v916, %v938
    %v947 = vmul.f32 %v939, %v939
    %v948 = vmul.f32 %v940, %v940
    %v949 = vmul.f32 %v941, %v941
    %v950 = vmul.f32 %v942, %v942
    %v951 = vmul.f32 %v943, %v943
    %v952 = vmul.f32 %v944, %v944
    %v953 = vmul.f32 %v945, %v945
    %v954 = vmul.f32 %v946, %v946
    %v955 = vsel %vm106, %v947, 0.0
    %v956 = vsel %vm106, %v948, 0.0
    %v957 = vadd.f32 %v955, %v956
    %v958 = vsel %vm106, %v949, 0.0
    %v959 = vadd.f32 %v957, %v958
    %v960 = vsel %vm106, %v950, 0.0
    %v961 = vadd.f32 %v959, %v960
    %v962 = vsel %vm106, %v951, 0.0
    %v963 = vadd.f32 %v961, %v962
    %v964 = vsel %vm106, %v952, 0.0
    %v965 = vadd.f32 %v963, %v964
    %v966 = vsel %vm106, %v953, 0.0
    %v967 = vadd.f32 %v965, %v966
    %v968 = vsel %vm106, %v954, 0.0
    %v969 = vadd.f32 %v967, %v968
    %v970 = vrot.slane %v969, 4
    %v971 = vadd.f32 %v969, %v970
    %v972 = vrot.slane %v971, 2
    %v973 = vadd.f32 %v971, %v972
    %v974 = vrot.slane %v973, 1
    %v975 = vadd.f32 %v973, %v974
    %v976 = vmul.f32 %v975, %v685
    %v977 = vadd.f32 %v976, 1e-05
    %v978 = vrsqrt.pop %v977
    %v979 = vmul.f32 %v939, %v978
    %v980 = vmul.f32 %v940, %v978
    %v981 = vmul.f32 %v941, %v978
    %v982 = vmul.f32 %v942, %v978
    %v983 = vmul.f32 %v943, %v978
    %v984 = vmul.f32 %v944, %v978
    %v985 = vmul.f32 %v945, %v978
    %v986 = vmul.f32 %v946, %v978
    %s987 = scalar_lea.vmem %s6, 2
    %v988 = vld [vmem:[%s987] sm:$0x1]
    %v990 = vlaneseq
    %v991 = vshrl.u32 %v990, 7
    %v992 = vsub.s32 0, %v991
    %v993 = vrot.slane %v988, %v992
    %v995 = vmul.f32 %v979, %v993
    %v996 = vmul.f32 %v980, %v993
    %v997 = vmul.f32 %v981, %v993
    %v998 = vmul.f32 %v982, %v993
    %v999 = vmul.f32 %v983, %v993
    %v1000 = vmul.f32 %v984, %v993
    %v1001 = vmul.f32 %v985, %v993
    %v1002 = vmul.f32 %v986, %v993
    %s1003 = scalar_lea.vmem %s7, 2
    %v1004 = vld [vmem:[%s1003] sm:$0x1]
    %v1006 = vlaneseq
    %v1007 = vshrl.u32 %v1006, 7
    %v1008 = vsub.s32 0, %v1007
    %v1009 = vrot.slane %v1004, %v1008
    %v1011 = vadd.f32 %v995, %v1009
    %v1012 = vadd.f32 %v996, %v1009
    %v1013 = vadd.f32 %v997, %v1009
    %v1014 = vadd.f32 %v998, %v1009
    %v1015 = vadd.f32 %v999, %v1009
    %v1016 = vadd.f32 %v1000, %v1009
    %v1017 = vadd.f32 %v1001, %v1009
    %v1018 = vadd.f32 %v1002, %v1009
    %s1019 = scalar_lea.vmem [#allocation10], 64
    %v1020 = vld [vmem:[%s1019] sm:$0xff]
    %v1021 = vld [vmem:[%s1019 + $0x8] sm:$0xff]
    %v1022 = vld [vmem:[%s1019 + $0x10] sm:$0xff]
    %v1023 = vld [vmem:[%s1019 + $0x18] sm:$0xff]
    %s1024 = scalar_lea.vmem %s9, 2
    %v1025 = vld [vmem:[%s1024] sm:$0x1]
    %v1027 = vlaneseq
    %v1028 = vshrl.u32 %v1027, 7
    %v1029 = vsub.s32 0, %v1028
    %v1030 = vrot.slane %v1025, %v1029
    %v1033 = vsel %vm106, %v1011, 0
    %v1036 = vsel %vm106, %v1012, 0
    %v1039 = vsel %vm106, %v1013, 0
    %v1042 = vsel %vm106, %v1014, 0
    %v1045 = vsel %vm106, %v1015, 0
    %v1048 = vsel %vm106, %v1016, 0
    %v1051 = vsel %vm106, %v1017, 0
    %v1054 = vsel %vm106, %v1018, 0
    %1056 = vmatprep.subr.mxu0 0.0
    %1057 = vmatpush1.msra.mxu0 0.0
    %1058 = vmatprep.subr.mxu0 0.0
    %1059 = vmatpush1.msra.mxu0 0.0
    %1060 = vmatprep.subr.mxu0 0.0
    %1061 = vmatpush1.msra.mxu0 0.0
    %1062 = vmatprep.subr.mxu0 0.0
    %1063 = vmatpush1.msra.mxu0 0.0
    %1064 = vmatprep.subr.mxu0 0.0
    %1065 = vmatpush1.msra.mxu0 0.0
    %1066 = vmatprep.subr.mxu0 0.0
    %1067 = vmatpush1.msra.mxu0 0.0
    %1068 = vmatprep.subr.mxu0 0.0
    %1069 = vmatpush1.msra.mxu0 0.0
    %1070 = vmatprep.subr.mxu0 0.0
    %1071 = vmatpush1.msra.mxu0 0.0
    %1072 = vmatprep.subr.mxu0 0.0
    %1073 = vmatpush1.msra.mxu0 0.0
    %1074 = vmatprep.subr.mxu0 0.0
    %1075 = vmatpush1.msra.mxu0 0.0
    %1076 = vmatprep.subr.mxu0 0.0
    %1077 = vmatpush1.msra.mxu0 0.0
    %1078 = vmatprep.subr.mxu0 0.0
    %1079 = vmatpush1.msra.mxu0 0.0
    %1080 = vmatprep.subr.mxu0 0.0
    %1081 = vmatpush1.msra.mxu0 %v1023
    %1082 = vmatprep.subr.mxu0 0.0
    %1083 = vmatpush1.msra.mxu0 %v1022
    %1084 = vmatprep.subr.mxu0 0.0
    %1085 = vmatpush1.msra.mxu0 %v1021
    %1086 = vmatprep.subr.mxu0 0.0
    %1087 = vmatpush1.msra.mxu0 %v1020
    %1088 = vmatprep.subr.mxu0 0.0
    %1089 = vmatpush2.msra.mxu0 0.0
    %1090 = vmatprep.subr.mxu0 0.0
    %1091 = vmatpush2.msra.mxu0 0.0
    %1092 = vmatprep.subr.mxu0 0.0
    %1093 = vmatpush2.msra.mxu0 0.0
    %1094 = vmatprep.subr.mxu0 0.0
    %1095 = vmatpush2.msra.mxu0 0.0
    %1096 = vmatprep.subr.mxu0 0.0
    %1097 = vmatpush2.msra.mxu0 0.0
    %1098 = vmatprep.subr.mxu0 0.0
    %1099 = vmatpush2.msra.mxu0 0.0
    %1100 = vmatprep.subr.mxu0 0.0
    %1101 = vmatpush2.msra.mxu0 0.0
    %1102 = vmatprep.subr.mxu0 0.0
    %1103 = vmatpush2.msra.mxu0 0.0
    %1104 = vmatprep.subr.mxu0 0.0
    %1105 = vmatpush2.msra.mxu0 0.0
    %1106 = vmatprep.subr.mxu0 0.0
    %1107 = vmatpush2.msra.mxu0 0.0
    %1108 = vmatprep.subr.mxu0 0.0
    %1109 = vmatpush2.msra.mxu0 0.0
    %1110 = vmatprep.subr.mxu0 0.0
    %1111 = vmatpush2.msra.mxu0 0.0
    %1112 = vmatprep.subr.mxu0 0.0
    %1113 = vmatpush2.msra.mxu0 0.0
    %1114 = vmatprep.subr.mxu0 0.0
    %1115 = vmatpush2.msra.mxu0 0.0
    %1116 = vmatprep.subr.mxu0 0.0
    %1117 = vmatpush2.msra.mxu0 0.0
    %1118 = vmatprep.subr.mxu0 0.0
    %1119 = vmatpush2.msra.mxu0 0.0
    %1120 = vmatprep.mubr.f32.mxu0 0.0
    %1121 = vmatmul.mubr.f32.gmra.mxu0 %v1033
    %v1122 = vpop.f32.mrf.mxu0
    %v1123 = vadd.f32 %v1030, %v1122
    %v1124 = vpop.f32.mrf.mxu0
    %1125 = vmatprep.mubr.f32.mxu0 0.0
    %1126 = vmatmul.mubr.f32.gmra.mxu0 %v1036
    %v1127 = vpop.f32.mrf.mxu0
    %v1128 = vadd.f32 %v1030, %v1127
    %v1129 = vpop.f32.mrf.mxu0
    %1130 = vmatprep.mubr.f32.mxu0 0.0
    %1131 = vmatmul.mubr.f32.gmra.mxu0 %v1039
    %v1132 = vpop.f32.mrf.mxu0
    %v1133 = vadd.f32 %v1030, %v1132
    %v1134 = vpop.f32.mrf.mxu0
    %1135 = vmatprep.mubr.f32.mxu0 0.0
    %1136 = vmatmul.mubr.f32.gmra.mxu0 %v1042
    %v1137 = vpop.f32.mrf.mxu0
    %v1138 = vadd.f32 %v1030, %v1137
    %v1139 = vpop.f32.mrf.mxu0
    %1140 = vmatprep.mubr.f32.mxu0 0.0
    %1141 = vmatmul.mubr.f32.gmra.mxu0 %v1045
    %v1142 = vpop.f32.mrf.mxu0
    %v1143 = vadd.f32 %v1030, %v1142
    %v1144 = vpop.f32.mrf.mxu0
    %1145 = vmatprep.mubr.f32.mxu0 0.0
    %1146 = vmatmul.mubr.f32.gmra.mxu0 %v1048
    %v1147 = vpop.f32.mrf.mxu0
    %v1148 = vadd.f32 %v1030, %v1147
    %v1149 = vpop.f32.mrf.mxu0
    %1150 = vmatprep.mubr.f32.mxu0 0.0
    %1151 = vmatmul.mubr.f32.gmra.mxu0 %v1051
    %v1152 = vpop.f32.mrf.mxu0
    %v1153 = vadd.f32 %v1030, %v1152
    %v1154 = vpop.f32.mrf.mxu0
    %1155 = vmatprep.mubr.f32.mxu0 0.0
    %1156 = vmatmul.mubr.f32.gmra.mxu0 %v1054
    %v1157 = vpop.f32.mrf.mxu0
    %v1158 = vadd.f32 %v1030, %v1157
    %v1159 = vpop.f32.mrf.mxu0
    %1160 = vdwg.mxu0
    %1161 = vmax.xlane.f32.xlu0 %v1123
    %v1162 = vpop.xlane.xlu0 %1161
    %1163 = vmax.xlane.f32.xlu0 %v1128
    %v1164 = vpop.xlane.xlu0 %1163
    %1165 = vmax.xlane.f32.xlu0 %v1133
    %v1166 = vpop.xlane.xlu0 %1165
    %1167 = vmax.xlane.f32.xlu0 %v1138
    %v1168 = vpop.xlane.xlu0 %1167
    %1169 = vmax.xlane.f32.xlu0 %v1143
    %v1170 = vpop.xlane.xlu0 %1169
    %1171 = vmax.xlane.f32.xlu0 %v1148
    %v1172 = vpop.xlane.xlu0 %1171
    %1173 = vmax.xlane.f32.xlu0 %v1153
    %v1174 = vpop.xlane.xlu0 %1173
    %1175 = vmax.xlane.f32.xlu0 %v1158
    %v1176 = vpop.xlane.xlu0 %1175
    %v1177 = vsub.f32 %v1123, %v1162
    %v1178 = vsub.f32 %v1128, %v1164
    %v1179 = vsub.f32 %v1133, %v1166
    %v1180 = vsub.f32 %v1138, %v1168
    %v1181 = vsub.f32 %v1143, %v1170
    %v1182 = vsub.f32 %v1148, %v1172
    %v1183 = vsub.f32 %v1153, %v1174
    %v1184 = vsub.f32 %v1158, %v1176
    %v1185 = vmul.f32 %v1177, 1.442695
    %v1186 = vpow.pop %v1185
    %v1187 = vmul.f32 %v1178, 1.442695
    %v1188 = vpow.pop %v1187
    %v1189 = vmul.f32 %v1179, 1.442695
    %v1190 = vpow.pop %v1189
    %v1191 = vmul.f32 %v1180, 1.442695
    %v1192 = vpow.pop %v1191
    %v1193 = vmul.f32 %v1181, 1.442695
    %v1194 = vpow.pop %v1193
    %v1195 = vmul.f32 %v1182, 1.442695
    %v1196 = vpow.pop %v1195
    %v1197 = vmul.f32 %v1183, 1.442695
    %v1198 = vpow.pop %v1197
    %v1199 = vmul.f32 %v1184, 1.442695
    %v1200 = vpow.pop %v1199
    %1201 = vadd.xlane.f32.xlu0 %v1186
    %v1202 = vpop.xlane.xlu0 %1201
    %1203 = vadd.xlane.f32.xlu0 %v1188
    %v1204 = vpop.xlane.xlu0 %1203
    %1205 = vadd.xlane.f32.xlu0 %v1190
    %v1206 = vpop.xlane.xlu0 %1205
    %1207 = vadd.xlane.f32.xlu0 %v1192
    %v1208 = vpop.xlane.xlu0 %1207
    %1209 = vadd.xlane.f32.xlu0 %v1194
    %v1210 = vpop.xlane.xlu0 %1209
    %1211 = vadd.xlane.f32.xlu0 %v1196
    %v1212 = vpop.xlane.xlu0 %1211
    %1213 = vadd.xlane.f32.xlu0 %v1198
    %v1214 = vpop.xlane.xlu0 %1213
    %1215 = vadd.xlane.f32.xlu0 %v1200
    %v1216 = vpop.xlane.xlu0 %1215
    %v1217 = vlog2.pop %v1202
    %v1218 = vmul.f32 %v1217, 0.6931472
    %v1219 = vlog2.pop %v1204
    %v1220 = vmul.f32 %v1219, 0.6931472
    %v1221 = vlog2.pop %v1206
    %v1222 = vmul.f32 %v1221, 0.6931472
    %v1223 = vlog2.pop %v1208
    %v1224 = vmul.f32 %v1223, 0.6931472
    %v1225 = vlog2.pop %v1210
    %v1226 = vmul.f32 %v1225, 0.6931472
    %v1227 = vlog2.pop %v1212
    %v1228 = vmul.f32 %v1227, 0.6931472
    %v1229 = vlog2.pop %v1214
    %v1230 = vmul.f32 %v1229, 0.6931472
    %v1231 = vlog2.pop %v1216
    %v1232 = vmul.f32 %v1231, 0.6931472
    %v1233 = vsub.f32 %v1177, %v1218
    %v1234 = vsub.f32 %v1178, %v1220
    %v1235 = vsub.f32 %v1179, %v1222
    %v1236 = vsub.f32 %v1180, %v1224
    %v1237 = vsub.f32 %v1181, %v1226
    %v1238 = vsub.f32 %v1182, %v1228
    %v1239 = vsub.f32 %v1183, %v1230
    %v1240 = vsub.f32 %v1184, %v1232
    %1241 = vst [vmem:[#allocation14] sm:$0xff] %v1233
    %1242 = vst [vmem:[#allocation14 + $0x8] sm:$0xff] %v1234
    %1243 = vst [vmem:[#allocation14 + $0x10] sm:$0xff] %v1235
    %1244 = vst [vmem:[#allocation14 + $0x18] sm:$0xff] %v1236
    %1245 = vst [vmem:[#allocation14 + $0x20] sm:$0xff] %v1237
    %1246 = vst [vmem:[#allocation14 + $0x28] sm:$0xff] %v1238
    %1247 = vst [vmem:[#allocation14 + $0x30] sm:$0xff] %v1239
    %1248 = vst [vmem:[#allocation14 + $0x38] sm:$0xff] %v1240
    // Predicated region
    $region62: #{tpu_custom_call.1} parent=1 // pred_check
      _
    $region63: #{tpu_custom_call.1} parent=1 // pred_check_branch
      %1250 = sbr.rel (0) target = $region65
    $region64: #{tpu_custom_call.1} parent=1 // pred_region
      %s1252 = ssub.s32 128, 128
      %1253 = vsyncadd [#allocation4], %s1252
      %s1255 = sshll.u32 [#allocation11], 4
      %s1256 = int_to_ptr.vmem [resolvable:$true] %s1255
      %1258 = dma.vmem_to_hbm [thread:$0]  %s1256, 128, %s10, [#allocation4]
    $region65: #{tpu_custom_call.1} parent=1 // pred_fallthru
      _
    // Predicated region
    $region66: #{tpu_custom_call.1} parent=1 // pred_check
      _
    $region67: #{tpu_custom_call.1} parent=1 // pred_check_branch
      %1260 = sbr.rel (0) target = $region69
    $region68: #{tpu_custom_call.1} parent=1 // pred_region
      %s1262 = ssub.s32 128, 128
      %1263 = vsyncadd [#allocation13], %s1262
      %s1265 = sshll.u32 [#allocation12], 4
      %s1266 = int_to_ptr.vmem [resolvable:$true] %s1265
      %1268 = dma.vmem_to_hbm [thread:$0]  %s1266, 128, %s11, [#allocation13]
    $region69: #{tpu_custom_call.1} parent=1 // pred_fallthru
      _
    // Predicated region
    $region70: #{tpu_custom_call.1} parent=1 // pred_check
      _
    $region71: #{tpu_custom_call.1} parent=1 // pred_check_branch
      %1270 = sbr.rel (0) target = $region73
    $region72: #{tpu_custom_call.1} parent=1 // pred_region
      %s1272 = ssub.s32 1024, 1024
      %1273 = vsyncadd [#allocation13], %s1272
      %s1274 = sshll.u32 [#allocation14], 4
      %s1275 = int_to_ptr.vmem [resolvable:$true] %s1274
      %1280 = dma.vmem_to_hbm [thread:$0]  %s1275, 1024, %s12, [#allocation13], 128, 128, 8
    $region73: #{tpu_custom_call.1} parent=1 // pred_fallthru
      _
    // Predicated region
    $region74: #{tpu_custom_call.1} parent=1 // pred_check
      _
    $region75: #{tpu_custom_call.1} parent=1 // pred_check_branch
      %1282 = sbr.rel (0) target = $region77
    $region76: #{tpu_custom_call.1} parent=1 // pred_region
      %1283 = dma.done [#allocation4], 128
    $region77: #{tpu_custom_call.1} parent=1 // pred_fallthru
      _
    // Predicated region
    $region78: #{tpu_custom_call.1} parent=1 // pred_check
      _
    $region79: #{tpu_custom_call.1} parent=1 // pred_check_branch
      %1285 = sbr.rel (0) target = $region81
    $region80: #{tpu_custom_call.1} parent=1 // pred_region
      %1286 = dma.done [#allocation13], 128
    $region81: #{tpu_custom_call.1} parent=1 // pred_fallthru
      _
    // Predicated region
    $region82: #{tpu_custom_call.1} parent=1 // pred_check
      _
    $region83: #{tpu_custom_call.1} parent=1 // pred_check_branch
      %1288 = sbr.rel (0) target = $region85
    $region84: #{tpu_custom_call.1} parent=1 // pred_region
      %1289 = dma.done [#allocation13], 1024
    $region85: #{tpu_custom_call.1} parent=1 // pred_fallthru
      _
    %1290 = vsyncpa [#allocation3], 1
    %1291 = vsyncpa [#allocation6], 1
    %1292 = vsyncpa [#allocation9], 1
    %1293 = vsyncpa [#allocation4], 1
    %1294 = vsyncpa [#allocation13], 1

</llo_original>
